<compile_context>
chip_gen: v5e
topology: v5e:2x2
jax: 0.10.0
libtpu: 0.0.40
codegen_flags: <defaults>
</compile_context>

<pallas_src>
import functools
import math

import jax
import jax.numpy as jnp
from jax.experimental import pallas as pl
from jax.experimental.pallas import tpu as pltpu

EPS = 1e-5                   # GroupNorm / LayerNorm default eps in PyTorch
RES_SCALE = math.sqrt(0.5)   # fairseq ConvAggregator residual_scale=0.5 -> sqrt

# Small-shape analogue of the fairseq wav2vec 1.0 architecture:
#   feature extractor [(512,10,5),(512,8,4),...] -> [(32,10,5),(32,8,4)]
#   aggregator        [(512,3,1)]*9              -> [(32,3,1)]*2
FEAT_LAYERS = [(32, 10, 5), (32, 8, 4)]   # (C_out, kernel, stride)
AGG_LAYERS = [(32, 3, 1), (32, 3, 1)]     # (C_out, kernel, stride=1)

C_OUT = 32                     # true channel count (= lane-group width)
C_PAD = 128                    # lane-dense padded width
MAX_LANE_GROUPS = C_PAD // C_OUT   # up to 4 batch elements packed into lanes
K1_SLOT = 16                   # first-layer taps padded to 16 per batch group


def _round_up(x, m):
    return (x + m - 1) // m * m


# --------------------------------------------------------------------------
# Fused Pallas kernel (single grid step; whole batch resident in VMEM,
# batch elements packed side by side in 32-lane groups)
# --------------------------------------------------------------------------
def _w2v1_fused_kernel(p1_ref, w1_ref, w2_ref, w3_ref, w4_ref, gb_ref,
                       gsum_ref, o_ref, h1_ref, *,
                       n_batch, t1_valid, t1_pad, t1_buf,
                       t2_valid, t2_pad, k2, s2, k3):
    f32 = jnp.float32
    bf16 = jnp.bfloat16
    c_pad = o_ref.shape[-1]

    # Zero only the gap rows of the tap buffer; rows [0, t1_pad) are fully
    # overwritten below, so taps of padded layer-2 output rows read exact 0s.
    if t1_buf > t1_pad:
        h1_ref[pl.ds(t1_pad, t1_buf - t1_pad), :] = jnp.zeros(
            (t1_buf - t1_pad, c_pad), f32)

    # Full-width row-validity masks, built once (JAX does not CSE
    # broadcast_in_dim, so avoid re-broadcasting (T,1) masks per use).
    mask1 = jax.lax.broadcasted_iota(jnp.int32, (t1_pad, c_pad), 0) < t1_valid
    mask2 = jax.lax.broadcasted_iota(jnp.int32, (t2_pad, c_pad), 0) < t2_valid

    def group_norm_relu(y, norm_idx, n_rows, pre_mask):
        """GroupNorm(num_groups=1, affine) per 32-lane batch group + ReLU.

        Padded time rows may hold garbage for layers whose taps read outside
        the valid region, so they are masked before the one-pass statistics.
        Unused lane groups are all-zero (zero gamma/beta) and stay zero.
        """
        if pre_mask is not None:
            y = jnp.where(pre_mask, y, 0.0)
        # Per-lane column sums, then per-32-lane-group sums broadcast back to
        # every lane of the group with one tiny f32 matmul against a
        # block-diagonal ones matrix.
        cs = jnp.sum(y, axis=0, keepdims=True)
        css = jnp.sum(y * y, axis=0, keepdims=True)
        st = jnp.dot(jnp.concatenate([cs, css], axis=0), gsum_ref[...],
                     preferred_element_type=f32)              # (2, C_PAD)
        inv_n = 1.0 / float(n_rows * C_OUT)
        mean = st[0:1, :] * inv_n
        var = st[1:2, :] * inv_n - mean * mean
        inv = jax.lax.rsqrt(var + EPS)
        g = gb_ref[2 * norm_idx:2 * norm_idx + 1, :]
        b = gb_ref[2 * norm_idx + 1:2 * norm_idx + 2, :]
        return jnp.maximum((y - mean) * inv * g + b, 0.0)

    # ---- feature layer 1: ONE matmul for all batch elements ----------------
    y1 = jnp.dot(p1_ref[...], w1_ref[...], preferred_element_type=f32)
    # padded rows of p1 are exactly zero -> no pre-stats mask needed
    y1 = group_norm_relu(y1, 0, t1_valid, None)
    y1 = jnp.where(mask1, y1, 0.0)
    h1_ref[pl.ds(0, t1_pad), :] = y1

    # ---- feature layer 2: conv taps folded into the contraction dim --------
    taps2 = [h1_ref[pl.ds(k, t2_pad, stride=s2), :].astype(bf16)
             for k in range(k2)]
    lhs2 = jnp.concatenate(taps2, axis=1)              # (t2_pad, k2*C_PAD) bf16
    acc = jnp.dot(lhs2, w2_ref[...], preferred_element_type=f32)
    x = group_norm_relu(acc, 1, t2_valid, mask2)
    x = jnp.where(mask2, x, 0.0)

    # ---- aggregator: [rep-pad(k3-1) -> conv -> GroupNorm -> ReLU] + skip ---
    for li, w_ref in enumerate((w3_ref, w4_ref)):
        x0 = x[0:1, :]
        taps = []
        for k in range(k3):
            shift = k3 - 1 - k        # causal: tap k reads x[t + k - (k3-1)]
            if shift == 0:
                taps.append(x)
            else:                     # shift down, replicate row 0 at the top
                taps.append(jnp.concatenate(
                    [x0] * shift + [x[:t2_pad - shift, :]], axis=0))
        lhs = jnp.concatenate(taps, axis=1).astype(bf16)   # (t2_pad, k3*C_PAD)
        acc = jnp.dot(lhs, w_ref[...], preferred_element_type=f32)
        y = group_norm_relu(acc, 2 + li, t2_valid, mask2)
        y = jnp.where(mask2, y, 0.0)
        x = (y + x) * RES_SCALE        # fairseq residual_scale = 0.5

    # ---- F.layer_norm(out, out.shape): whole-tensor norm over all batches --
    # Padded rows / lanes are exactly zero, so full sums == valid sums.
    inv_n_all = 1.0 / float(n_batch * t2_valid * C_OUT)
    total = jnp.sum(x)
    total_sq = jnp.sum(x * x)
    mean = total * inv_n_all
    var = total_sq * inv_n_all - mean * mean
    inv = jax.lax.rsqrt(var + EPS)
    o_ref[...] = (x - mean) * inv


# --------------------------------------------------------------------------
# JAX glue: block-diagonal weight packing, first-layer im2col, wrapper
# --------------------------------------------------------------------------
def _pad_to(x, shape):
    return jnp.pad(x, [(0, s - d) for d, s in zip(x.shape, shape)])


def _pack_w1(w, bsz):
    """First-layer Conv1d weight (C_OUT, 1, k1) -> (C_PAD, C_PAD) bf16 with one
    (k1, C_OUT) block per batch lane group (block-diagonal over groups)."""
    _, _, k = w.shape
    m = jnp.transpose(w[:, 0, :], (1, 0))                     # (k1, C_OUT)
    out = jnp.zeros((C_PAD, C_PAD), jnp.float32)
    for g in range(bsz):
        out = out.at[g * K1_SLOT:g * K1_SLOT + k,
                     g * C_OUT:(g + 1) * C_OUT].set(m)
    return out.astype(jnp.bfloat16)


def _pack_w_folded(w, bsz):
    """Conv1d weight (C_OUT, C_IN, K) -> (K*C_PAD, C_PAD) bf16: taps stacked in
    the contraction dim, one (C_IN, C_OUT) block per batch lane group."""
    _, c_in, k = w.shape
    wk = jnp.transpose(w, (2, 1, 0))                          # (K, C_IN, C_OUT)
    out = jnp.zeros((k * C_PAD, C_PAD), jnp.float32)
    for kk in range(k):
        for g in range(bsz):
            out = out.at[kk * C_PAD + g * C_OUT:kk * C_PAD + g * C_OUT + c_in,
                         g * C_OUT:(g + 1) * C_OUT].set(wk[kk])
    return out.astype(jnp.bfloat16)


def _pack_gamma_beta(layer_params, bsz):
    """gamma/beta of all 4 norms -> (8, C_PAD) f32, replicated per batch lane
    group (zeros in unused groups so padded lanes stay exactly zero)."""
    rows = []
    for p in layer_params:
        for v in (p["g"], p["b"]):
            lane = jnp.zeros((C_PAD,), jnp.float32)
            for g in range(bsz):
                lane = lane.at[g * C_OUT:(g + 1) * C_OUT].set(v)
            rows.append(lane)
    return jnp.stack(rows)


def _group_sum_matrix():
    """(C_PAD, C_PAD) block-diagonal ones: one matmul turns per-lane column
    sums into per-32-lane-group sums broadcast back to every lane."""
    gi = jnp.arange(C_PAD)[:, None] // C_OUT
    gj = jnp.arange(C_PAD)[None, :] // C_OUT
    return (gi == gj).astype(jnp.float32)


def _first_layer_patches(wav, k, stride, t1, t1_pad):
    """(B, T) waveform -> (t1_pad, C_PAD) bf16 im2col patches; batch b's k taps
    live in columns [b*K1_SLOT, b*K1_SLOT + k)."""
    bsz, _ = wav.shape
    idx = jnp.arange(t1)[:, None] * stride + jnp.arange(k)[None, :]
    p = wav[:, idx]                                           # (B, t1, k)
    p = _pad_to(p, (bsz, t1_pad, K1_SLOT))
    p = jnp.transpose(p, (1, 0, 2)).reshape(t1_pad, bsz * K1_SLOT)
    return _pad_to(p, (t1_pad, C_PAD)).astype(jnp.bfloat16)


def _forward_impl(wav, params):
    bsz, t = wav.shape
    (c1, k1, s1), (c2, k2, s2) = FEAT_LAYERS
    (ca1, ka1, _), (ca2, ka2, _) = AGG_LAYERS
    assert ka1 == ka2 and c1 == c2 == ca1 == ca2 == C_OUT
    # TODO(synk): batch > 4 (and v7x dual-TensorCore) needs an outer 'parallel'
    # grid axis with the whole-tensor LayerNorm split into per-step partials.
    assert bsz <= MAX_LANE_GROUPS

    t1 = (t - k1) // s1 + 1
    t2 = (t1 - k2) // s2 + 1
    t1_pad = _round_up(t1, 8)
    t2_pad = _round_up(t2, 8)
    # tap buffer covers the furthest row touched by any (padded) output row
    t1_buf = max(_round_up((t2_pad - 1) * s2 + k2, 8), t1_pad)

    f1, f2 = params["feat"]
    a1, a2 = params["agg"]

    p1 = _first_layer_patches(wav, k1, s1, t1, t1_pad)
    w1 = _pack_w1(f1["w"], bsz)
    w2 = _pack_w_folded(f2["w"], bsz)
    w3 = _pack_w_folded(a1["w"], bsz)
    w4 = _pack_w_folded(a2["w"], bsz)
    gb = _pack_gamma_beta((f1, f2, a1, a2), bsz)
    gsum = _group_sum_matrix()

    kernel = functools.partial(
        _w2v1_fused_kernel,
        n_batch=bsz, t1_valid=t1, t1_pad=t1_pad, t1_buf=t1_buf,
        t2_valid=t2, t2_pad=t2_pad, k2=k2, s2=s2, k3=ka1)

    out = pl.pallas_call(
        kernel,
        out_shape=jax.ShapeDtypeStruct((t2_pad, C_PAD), jnp.float32),
        scratch_shapes=[pltpu.VMEM((t1_buf, C_PAD), jnp.float32)],
    )(p1, w1, w2, w3, w4, gb, gsum)

    # Un-pack batch elements from the lane groups; .squeeze(0)/.transpose(2,1)
    # of the reference are layout no-ops here.  Strip time / lane padding.
    out = out.reshape(t2_pad, MAX_LANE_GROUPS, C_OUT)
    return jnp.transpose(out, (1, 0, 2))[:bsz, :t2, :]


fairseq_wav2vec1_forward = jax.jit(_forward_impl)


# --------------------------------------------------------------------------
# Deterministic synthetic parameters (no checkpoint download) + f32 reference
# --------------------------------------------------------------------------
def init_params(key):
    params = {"feat": [], "agg": []}
    c_in = 1
    for (c_out, k, _) in FEAT_LAYERS:
        key, wk = jax.random.split(key)
        w = jax.random.normal(wk, (c_out, c_in, k), jnp.float32) / jnp.sqrt(c_in * k)
        params["feat"].append({"w": w,
                               "g": jnp.ones((c_out,), jnp.float32),
                               "b": jnp.zeros((c_out,), jnp.float32)})
        c_in = c_out
    for (c_out, k, _) in AGG_LAYERS:
        key, wk = jax.random.split(key)
        w = jax.random.normal(wk, (c_out, c_in, k), jnp.float32) / jnp.sqrt(c_in * k)
        params["agg"].append({"w": w,
                              "g": jnp.ones((c_out,), jnp.float32),
                              "b": jnp.zeros((c_out,), jnp.float32)})
        c_in = c_out
    return params


def _conv1d_nc(x, w, stride):
    return jax.lax.conv_general_dilated(
        x, w, window_strides=(stride,), padding="VALID",
        dimension_numbers=("NCH", "OIH", "NCH"))


def _gn1(x, g, b):
    mean = jnp.mean(x, axis=(1, 2), keepdims=True)
    var = jnp.mean((x - mean) ** 2, axis=(1, 2), keepdims=True)
    xn = (x - mean) * jax.lax.rsqrt(var + EPS)
    return xn * g[None, :, None] + b[None, :, None]


def _reference_forward(wav, params):
    """Pure-JAX f32 reference of the same forward (loose numeric check)."""
    x = wav[:, None, :]                                       # (B, 1, T)
    for (c_out, k, s), p in zip(FEAT_LAYERS, params["feat"]):
        x = jnp.maximum(_gn1(_conv1d_nc(x, p["w"], s), p["g"], p["b"]), 0.0)
    for (c_out, k, s), p in zip(AGG_LAYERS, params["agg"]):
        xp = jnp.concatenate([jnp.repeat(x[:, :, :1], k - 1, axis=2), x], axis=2)
        y = jnp.maximum(_gn1(_conv1d_nc(xp, p["w"], 1), p["g"], p["b"]), 0.0)
        x = (y + x) * RES_SCALE
    out = jnp.transpose(x, (0, 2, 1))                         # (B, T', C)
    mean = jnp.mean(out)
    var = jnp.var(out)
    return (out - mean) * jax.lax.rsqrt(var + EPS)


if __name__ == "__main__":
    key = jax.random.PRNGKey(0)
    k_wav, k_params = jax.random.split(key)

    B, T = 2, 400
    wav = jax.random.normal(k_wav, (B, T), dtype=jnp.float32)
    params = init_params(k_params)

    out = fairseq_wav2vec1_forward(wav, params)
    out = jax.block_until_ready(out)

    # (400-10)//5+1 = 79 ; (79-8)//4+1 = 18 ; aggregator preserves length.
    assert out.shape == (B, 18, 32), out.shape
    assert out.dtype == jnp.float32
    assert bool(jnp.all(jnp.isfinite(out)))
    # whole-tensor layer norm => global mean ~0, var ~1
    assert abs(float(jnp.mean(out))) < 1e-4
    assert abs(float(jnp.var(out)) - 1.0) < 1e-2
    # loose check vs f32 reference (kernel uses bf16 MXU operands, f32 stats)
    ref = _reference_forward(wav, params)
    assert float(jnp.max(jnp.abs(out - ref))) < 0.15

    print("KERNEL_OK")
</pallas_src>

<mosaic_0001>
module attributes {stable_mosaic.version = 11 : i64} {
  func.func @_w2v1_fused_kernel(%arg0: memref<80x128xbf16, #tpu.memory_space<vmem>>, %arg1: memref<128x128xbf16, #tpu.memory_space<vmem>>, %arg2: memref<1024x128xbf16, #tpu.memory_space<vmem>>, %arg3: memref<384x128xbf16, #tpu.memory_space<vmem>>, %arg4: memref<384x128xbf16, #tpu.memory_space<vmem>>, %arg5: memref<8x128xf32, #tpu.memory_space<vmem>>, %arg6: memref<128x128xf32, #tpu.memory_space<vmem>>, %arg7: memref<24x128xf32, #tpu.memory_space<vmem>>, %arg8: memref<104x128xf32, #tpu.memory_space<vmem>>) attributes {dimension_semantics = [], scalar_prefetch = 0 : i64, scratch_operands = 1 : i64, tpu.core_type = #tpu.core_type<tc>} {
    %cst = arith.constant 0.000000e+00 : f32
    %0 = vector.broadcast %cst : f32 to vector<24x128xf32>
    %c80 = arith.constant 80 : index
    %c0 = arith.constant 0 : index
    %1 = vector.load %arg8[%c80, %c0] : memref<104x128xf32, #tpu.memory_space<vmem>>, vector<24x128xf32>
    tpu.vector_store %arg8[%c80, %c0], %0 {strides = array<i32>} : memref<104x128xf32, #tpu.memory_space<vmem>>, vector<24x128xf32>,
    %2 = tpu.iota {dimensions = array<i32: 0>} : vector<80x128xi32>
    %c79_i32 = arith.constant 79 : i32
    %3 = vector.broadcast %c79_i32 : i32 to vector<80x128xi32>
    %4 = arith.cmpi slt, %2, %3 : vector<80x128xi32>
    %5 = tpu.iota {dimensions = array<i32: 0>} : vector<24x128xi32>
    %c18_i32 = arith.constant 18 : i32
    %6 = vector.broadcast %c18_i32 : i32 to vector<24x128xi32>
    %7 = arith.cmpi slt, %5, %6 : vector<24x128xi32>
    %c0_0 = arith.constant 0 : index
    %c0_1 = arith.constant 0 : index
    %8 = vector.load %arg0[%c0_0, %c0_1] : memref<80x128xbf16, #tpu.memory_space<vmem>>, vector<80x128xbf16>
    %c0_2 = arith.constant 0 : index
    %c0_3 = arith.constant 0 : index
    %9 = vector.load %arg1[%c0_2, %c0_3] : memref<128x128xbf16, #tpu.memory_space<vmem>>, vector<128x128xbf16>
    %cst_4 = arith.constant dense<0.000000e+00> : vector<80x128xf32>
    %10 = tpu.matmul %8, %9, %cst_4 {dimension_numbers = #tpu.dot_dimension_numbers<[1], [0], [0], [1], [0, 0, 1, 1], [], []>} : vector<80x128xbf16>, vector<128x128xbf16>, vector<80x128xf32> -> vector<80x128xf32>
    %cst_5 = arith.constant dense<0.000000e+00> : vector<128xf32>
    %11 = vector.multi_reduction <add>, %10, %cst_5 [0] : vector<80x128xf32> to vector<128xf32>
    %12 = vector.shape_cast %11 : vector<128xf32> to vector<1x128xf32>
    %13 = arith.mulf %10, %10 : vector<80x128xf32>
    %cst_6 = arith.constant dense<0.000000e+00> : vector<128xf32>
    %14 = vector.multi_reduction <add>, %13, %cst_6 [0] : vector<80x128xf32> to vector<128xf32>
    %15 = vector.shape_cast %14 : vector<128xf32> to vector<1x128xf32>
    %16 = tpu.concatenate %12, %15 in 0 : vector<1x128xf32>, vector<1x128xf32> -> vector<2x128xf32>
    %c0_7 = arith.constant 0 : index
    %c0_8 = arith.constant 0 : index
    %17 = vector.load %arg6[%c0_7, %c0_8] : memref<128x128xf32, #tpu.memory_space<vmem>>, vector<128x128xf32>
    %cst_9 = arith.constant dense<0.000000e+00> : vector<2x128xf32>
    %18 = tpu.matmul %16, %17, %cst_9 {dimension_numbers = #tpu.dot_dimension_numbers<[1], [0], [0], [1], [0, 0, 1, 1], [], []>} : vector<2x128xf32>, vector<128x128xf32>, vector<2x128xf32> -> vector<2x128xf32>
    %19 = vector.extract_strided_slice %18 {offsets = [0, 0], sizes = [1, 128], strides = [1, 1]} : vector<2x128xf32> to vector<1x128xf32>
    %cst_10 = arith.constant 3.9556963E-4 : f32
    %20 = vector.broadcast %cst_10 : f32 to vector<1x128xf32>
    %21 = arith.mulf %19, %20 : vector<1x128xf32>
    %22 = vector.extract_strided_slice %18 {offsets = [1, 0], sizes = [1, 128], strides = [1, 1]} : vector<2x128xf32> to vector<1x128xf32>
    %cst_11 = arith.constant 3.9556963E-4 : f32
    %23 = vector.broadcast %cst_11 : f32 to vector<1x128xf32>
    %24 = arith.mulf %22, %23 : vector<1x128xf32>
    %25 = arith.mulf %21, %21 : vector<1x128xf32>
    %26 = arith.subf %24, %25 : vector<1x128xf32>
    %cst_12 = arith.constant 9.99999974E-6 : f32
    %27 = vector.broadcast %cst_12 : f32 to vector<1x128xf32>
    %28 = arith.addf %26, %27 : vector<1x128xf32>
    %29 = math.rsqrt %28 : vector<1x128xf32>
    %c0_13 = arith.constant 0 : index
    %c0_14 = arith.constant 0 : index
    %30 = vector.load %arg5[%c0_13, %c0_14] : memref<8x128xf32, #tpu.memory_space<vmem>>, vector<1x128xf32>
    %c1 = arith.constant 1 : index
    %c0_15 = arith.constant 0 : index
    %31 = vector.load %arg5[%c1, %c0_15] : memref<8x128xf32, #tpu.memory_space<vmem>>, vector<1x128xf32>
    %32 = vector.broadcast %21 : vector<1x128xf32> to vector<80x128xf32>
    %33 = arith.subf %10, %32 : vector<80x128xf32>
    %34 = vector.broadcast %29 : vector<1x128xf32> to vector<80x128xf32>
    %35 = arith.mulf %33, %34 : vector<80x128xf32>
    %36 = vector.broadcast %30 : vector<1x128xf32> to vector<80x128xf32>
    %37 = arith.mulf %35, %36 : vector<80x128xf32>
    %38 = vector.broadcast %31 : vector<1x128xf32> to vector<80x128xf32>
    %39 = arith.addf %37, %38 : vector<80x128xf32>
    %cst_16 = arith.constant 0.000000e+00 : f32
    %40 = vector.broadcast %cst_16 : f32 to vector<80x128xf32>
    %41 = arith.maximumf %39, %40 : vector<80x128xf32>
    %cst_17 = arith.constant 0.000000e+00 : f32
    %42 = vector.broadcast %cst_17 : f32 to vector<80x128xf32>
    %43 = arith.select %4, %41, %42 : vector<80x128xi1>, vector<80x128xf32>
    %c0_18 = arith.constant 0 : index
    %c0_19 = arith.constant 0 : index
    %44 = vector.load %arg8[%c0_18, %c0_19] : memref<104x128xf32, #tpu.memory_space<vmem>>, vector<80x128xf32>
    tpu.vector_store %arg8[%c0_18, %c0_19], %43 {strides = array<i32>} : memref<104x128xf32, #tpu.memory_space<vmem>>, vector<80x128xf32>,
    %c0_20 = arith.constant 0 : index
    %c0_21 = arith.constant 0 : index
    %45 = tpu.strided_load %arg8[%c0_20, %c0_21] {strides = array<i32: 4, 1>} : memref<104x128xf32, #tpu.memory_space<vmem>>, vector<24x128xf32>
    %46 = arith.truncf %45 : vector<24x128xf32> to vector<24x128xbf16>
    %c1_22 = arith.constant 1 : index
    %c0_23 = arith.constant 0 : index
    %47 = tpu.strided_load %arg8[%c1_22, %c0_23] {strides = array<i32: 4, 1>} : memref<104x128xf32, #tpu.memory_space<vmem>>, vector<24x128xf32>
    %48 = arith.truncf %47 : vector<24x128xf32> to vector<24x128xbf16>
    %c2 = arith.constant 2 : index
    %c0_24 = arith.constant 0 : index
    %49 = tpu.strided_load %arg8[%c2, %c0_24] {strides = array<i32: 4, 1>} : memref<104x128xf32, #tpu.memory_space<vmem>>, vector<24x128xf32>
    %50 = arith.truncf %49 : vector<24x128xf32> to vector<24x128xbf16>
    %c3 = arith.constant 3 : index
    %c0_25 = arith.constant 0 : index
    %51 = tpu.strided_load %arg8[%c3, %c0_25] {strides = array<i32: 4, 1>} : memref<104x128xf32, #tpu.memory_space<vmem>>, vector<24x128xf32>
    %52 = arith.truncf %51 : vector<24x128xf32> to vector<24x128xbf16>
    %c4 = arith.constant 4 : index
    %c0_26 = arith.constant 0 : index
    %53 = tpu.strided_load %arg8[%c4, %c0_26] {strides = array<i32: 4, 1>} : memref<104x128xf32, #tpu.memory_space<vmem>>, vector<24x128xf32>
    %54 = arith.truncf %53 : vector<24x128xf32> to vector<24x128xbf16>
    %c5 = arith.constant 5 : index
    %c0_27 = arith.constant 0 : index
    %55 = tpu.strided_load %arg8[%c5, %c0_27] {strides = array<i32: 4, 1>} : memref<104x128xf32, #tpu.memory_space<vmem>>, vector<24x128xf32>
    %56 = arith.truncf %55 : vector<24x128xf32> to vector<24x128xbf16>
    %c6 = arith.constant 6 : index
    %c0_28 = arith.constant 0 : index
    %57 = tpu.strided_load %arg8[%c6, %c0_28] {strides = array<i32: 4, 1>} : memref<104x128xf32, #tpu.memory_space<vmem>>, vector<24x128xf32>
    %58 = arith.truncf %57 : vector<24x128xf32> to vector<24x128xbf16>
    %c7 = arith.constant 7 : index
    %c0_29 = arith.constant 0 : index
    %59 = tpu.strided_load %arg8[%c7, %c0_29] {strides = array<i32: 4, 1>} : memref<104x128xf32, #tpu.memory_space<vmem>>, vector<24x128xf32>
    %60 = arith.truncf %59 : vector<24x128xf32> to vector<24x128xbf16>
    %61 = tpu.concatenate %46, %48, %50, %52, %54, %56, %58, %60 in 1 : vector<24x128xbf16>, vector<24x128xbf16>, vector<24x128xbf16>, vector<24x128xbf16>, vector<24x128xbf16>, vector<24x128xbf16>, vector<24x128xbf16>, vector<24x128xbf16> -> vector<24x1024xbf16>
    %c0_30 = arith.constant 0 : index
    %c0_31 = arith.constant 0 : index
    %62 = vector.load %arg2[%c0_30, %c0_31] : memref<1024x128xbf16, #tpu.memory_space<vmem>>, vector<1024x128xbf16>
    %cst_32 = arith.constant dense<0.000000e+00> : vector<24x128xf32>
    %63 = tpu.matmul %61, %62, %cst_32 {dimension_numbers = #tpu.dot_dimension_numbers<[1], [0], [0], [1], [0, 0, 1, 1], [], []>} : vector<24x1024xbf16>, vector<1024x128xbf16>, vector<24x128xf32> -> vector<24x128xf32>
    %cst_33 = arith.constant 0.000000e+00 : f32
    %64 = vector.broadcast %cst_33 : f32 to vector<24x128xf32>
    %65 = arith.select %7, %63, %64 : vector<24x128xi1>, vector<24x128xf32>
    %cst_34 = arith.constant dense<0.000000e+00> : vector<128xf32>
    %66 = vector.multi_reduction <add>, %65, %cst_34 [0] : vector<24x128xf32> to vector<128xf32>
    %67 = vector.shape_cast %66 : vector<128xf32> to vector<1x128xf32>
    %68 = arith.mulf %65, %65 : vector<24x128xf32>
    %cst_35 = arith.constant dense<0.000000e+00> : vector<128xf32>
    %69 = vector.multi_reduction <add>, %68, %cst_35 [0] : vector<24x128xf32> to vector<128xf32>
    %70 = vector.shape_cast %69 : vector<128xf32> to vector<1x128xf32>
    %71 = tpu.concatenate %67, %70 in 0 : vector<1x128xf32>, vector<1x128xf32> -> vector<2x128xf32>
    %c0_36 = arith.constant 0 : index
    %c0_37 = arith.constant 0 : index
    %72 = vector.load %arg6[%c0_36, %c0_37] : memref<128x128xf32, #tpu.memory_space<vmem>>, vector<128x128xf32>
    %cst_38 = arith.constant dense<0.000000e+00> : vector<2x128xf32>
    %73 = tpu.matmul %71, %72, %cst_38 {dimension_numbers = #tpu.dot_dimension_numbers<[1], [0], [0], [1], [0, 0, 1, 1], [], []>} : vector<2x128xf32>, vector<128x128xf32>, vector<2x128xf32> -> vector<2x128xf32>
    %74 = vector.extract_strided_slice %73 {offsets = [0, 0], sizes = [1, 128], strides = [1, 1]} : vector<2x128xf32> to vector<1x128xf32>
    %cst_39 = arith.constant 0.00173611112 : f32
    %75 = vector.broadcast %cst_39 : f32 to vector<1x128xf32>
    %76 = arith.mulf %74, %75 : vector<1x128xf32>
    %77 = vector.extract_strided_slice %73 {offsets = [1, 0], sizes = [1, 128], strides = [1, 1]} : vector<2x128xf32> to vector<1x128xf32>
    %cst_40 = arith.constant 0.00173611112 : f32
    %78 = vector.broadcast %cst_40 : f32 to vector<1x128xf32>
    %79 = arith.mulf %77, %78 : vector<1x128xf32>
    %80 = arith.mulf %76, %76 : vector<1x128xf32>
    %81 = arith.subf %79, %80 : vector<1x128xf32>
    %cst_41 = arith.constant 9.99999974E-6 : f32
    %82 = vector.broadcast %cst_41 : f32 to vector<1x128xf32>
    %83 = arith.addf %81, %82 : vector<1x128xf32>
    %84 = math.rsqrt %83 : vector<1x128xf32>
    %c2_42 = arith.constant 2 : index
    %c0_43 = arith.constant 0 : index
    %85 = vector.load %arg5[%c2_42, %c0_43] : memref<8x128xf32, #tpu.memory_space<vmem>>, vector<1x128xf32>
    %c3_44 = arith.constant 3 : index
    %c0_45 = arith.constant 0 : index
    %86 = vector.load %arg5[%c3_44, %c0_45] : memref<8x128xf32, #tpu.memory_space<vmem>>, vector<1x128xf32>
    %87 = vector.broadcast %76 : vector<1x128xf32> to vector<24x128xf32>
    %88 = arith.subf %65, %87 : vector<24x128xf32>
    %89 = vector.broadcast %84 : vector<1x128xf32> to vector<24x128xf32>
    %90 = arith.mulf %88, %89 : vector<24x128xf32>
    %91 = vector.broadcast %85 : vector<1x128xf32> to vector<24x128xf32>
    %92 = arith.mulf %90, %91 : vector<24x128xf32>
    %93 = vector.broadcast %86 : vector<1x128xf32> to vector<24x128xf32>
    %94 = arith.addf %92, %93 : vector<24x128xf32>
    %cst_46 = arith.constant 0.000000e+00 : f32
    %95 = vector.broadcast %cst_46 : f32 to vector<24x128xf32>
    %96 = arith.maximumf %94, %95 : vector<24x128xf32>
    %cst_47 = arith.constant 0.000000e+00 : f32
    %97 = vector.broadcast %cst_47 : f32 to vector<24x128xf32>
    %98 = arith.select %7, %96, %97 : vector<24x128xi1>, vector<24x128xf32>
    %99 = vector.extract_strided_slice %98 {offsets = [0, 0], sizes = [1, 128], strides = [1, 1]} : vector<24x128xf32> to vector<1x128xf32>
    %100 = vector.extract_strided_slice %98 {offsets = [0, 0], sizes = [22, 128], strides = [1, 1]} : vector<24x128xf32> to vector<22x128xf32>
    %101 = tpu.concatenate %99, %99, %100 in 0 : vector<1x128xf32>, vector<1x128xf32>, vector<22x128xf32> -> vector<24x128xf32>
    %102 = vector.extract_strided_slice %98 {offsets = [0, 0], sizes = [23, 128], strides = [1, 1]} : vector<24x128xf32> to vector<23x128xf32>
    %103 = tpu.concatenate %99, %102 in 0 : vector<1x128xf32>, vector<23x128xf32> -> vector<24x128xf32>
    %104 = tpu.concatenate %101, %103, %98 in 1 : vector<24x128xf32>, vector<24x128xf32>, vector<24x128xf32> -> vector<24x384xf32>
    %105 = arith.truncf %104 : vector<24x384xf32> to vector<24x384xbf16>
    %c0_48 = arith.constant 0 : index
    %c0_49 = arith.constant 0 : index
    %106 = vector.load %arg3[%c0_48, %c0_49] : memref<384x128xbf16, #tpu.memory_space<vmem>>, vector<384x128xbf16>
    %cst_50 = arith.constant dense<0.000000e+00> : vector<24x128xf32>
    %107 = tpu.matmul %105, %106, %cst_50 {dimension_numbers = #tpu.dot_dimension_numbers<[1], [0], [0], [1], [0, 0, 1, 1], [], []>} : vector<24x384xbf16>, vector<384x128xbf16>, vector<24x128xf32> -> vector<24x128xf32>
    %cst_51 = arith.constant 0.000000e+00 : f32
    %108 = vector.broadcast %cst_51 : f32 to vector<24x128xf32>
    %109 = arith.select %7, %107, %108 : vector<24x128xi1>, vector<24x128xf32>
    %cst_52 = arith.constant dense<0.000000e+00> : vector<128xf32>
    %110 = vector.multi_reduction <add>, %109, %cst_52 [0] : vector<24x128xf32> to vector<128xf32>
    %111 = vector.shape_cast %110 : vector<128xf32> to vector<1x128xf32>
    %112 = arith.mulf %109, %109 : vector<24x128xf32>
    %cst_53 = arith.constant dense<0.000000e+00> : vector<128xf32>
    %113 = vector.multi_reduction <add>, %112, %cst_53 [0] : vector<24x128xf32> to vector<128xf32>
    %114 = vector.shape_cast %113 : vector<128xf32> to vector<1x128xf32>
    %115 = tpu.concatenate %111, %114 in 0 : vector<1x128xf32>, vector<1x128xf32> -> vector<2x128xf32>
    %c0_54 = arith.constant 0 : index
    %c0_55 = arith.constant 0 : index
    %116 = vector.load %arg6[%c0_54, %c0_55] : memref<128x128xf32, #tpu.memory_space<vmem>>, vector<128x128xf32>
    %cst_56 = arith.constant dense<0.000000e+00> : vector<2x128xf32>
    %117 = tpu.matmul %115, %116, %cst_56 {dimension_numbers = #tpu.dot_dimension_numbers<[1], [0], [0], [1], [0, 0, 1, 1], [], []>} : vector<2x128xf32>, vector<128x128xf32>, vector<2x128xf32> -> vector<2x128xf32>
    %118 = vector.extract_strided_slice %117 {offsets = [0, 0], sizes = [1, 128], strides = [1, 1]} : vector<2x128xf32> to vector<1x128xf32>
    %cst_57 = arith.constant 0.00173611112 : f32
    %119 = vector.broadcast %cst_57 : f32 to vector<1x128xf32>
    %120 = arith.mulf %118, %119 : vector<1x128xf32>
    %121 = vector.extract_strided_slice %117 {offsets = [1, 0], sizes = [1, 128], strides = [1, 1]} : vector<2x128xf32> to vector<1x128xf32>
    %cst_58 = arith.constant 0.00173611112 : f32
    %122 = vector.broadcast %cst_58 : f32 to vector<1x128xf32>
    %123 = arith.mulf %121, %122 : vector<1x128xf32>
    %124 = arith.mulf %120, %120 : vector<1x128xf32>
    %125 = arith.subf %123, %124 : vector<1x128xf32>
    %cst_59 = arith.constant 9.99999974E-6 : f32
    %126 = vector.broadcast %cst_59 : f32 to vector<1x128xf32>
    %127 = arith.addf %125, %126 : vector<1x128xf32>
    %128 = math.rsqrt %127 : vector<1x128xf32>
    %c4_60 = arith.constant 4 : index
    %c0_61 = arith.constant 0 : index
    %129 = vector.load %arg5[%c4_60, %c0_61] : memref<8x128xf32, #tpu.memory_space<vmem>>, vector<1x128xf32>
    %c5_62 = arith.constant 5 : index
    %c0_63 = arith.constant 0 : index
    %130 = vector.load %arg5[%c5_62, %c0_63] : memref<8x128xf32, #tpu.memory_space<vmem>>, vector<1x128xf32>
    %131 = vector.broadcast %120 : vector<1x128xf32> to vector<24x128xf32>
    %132 = arith.subf %109, %131 : vector<24x128xf32>
    %133 = vector.broadcast %128 : vector<1x128xf32> to vector<24x128xf32>
    %134 = arith.mulf %132, %133 : vector<24x128xf32>
    %135 = vector.broadcast %129 : vector<1x128xf32> to vector<24x128xf32>
    %136 = arith.mulf %134, %135 : vector<24x128xf32>
    %137 = vector.broadcast %130 : vector<1x128xf32> to vector<24x128xf32>
    %138 = arith.addf %136, %137 : vector<24x128xf32>
    %cst_64 = arith.constant 0.000000e+00 : f32
    %139 = vector.broadcast %cst_64 : f32 to vector<24x128xf32>
    %140 = arith.maximumf %138, %139 : vector<24x128xf32>
    %cst_65 = arith.constant 0.000000e+00 : f32
    %141 = vector.broadcast %cst_65 : f32 to vector<24x128xf32>
    %142 = arith.select %7, %140, %141 : vector<24x128xi1>, vector<24x128xf32>
    %143 = arith.addf %142, %98 : vector<24x128xf32>
    %cst_66 = arith.constant 0.707106769 : f32
    %144 = vector.broadcast %cst_66 : f32 to vector<24x128xf32>
    %145 = arith.mulf %143, %144 : vector<24x128xf32>
    %146 = vector.extract_strided_slice %145 {offsets = [0, 0], sizes = [1, 128], strides = [1, 1]} : vector<24x128xf32> to vector<1x128xf32>
    %147 = vector.extract_strided_slice %145 {offsets = [0, 0], sizes = [22, 128], strides = [1, 1]} : vector<24x128xf32> to vector<22x128xf32>
    %148 = tpu.concatenate %146, %146, %147 in 0 : vector<1x128xf32>, vector<1x128xf32>, vector<22x128xf32> -> vector<24x128xf32>
    %149 = vector.extract_strided_slice %145 {offsets = [0, 0], sizes = [23, 128], strides = [1, 1]} : vector<24x128xf32> to vector<23x128xf32>
    %150 = tpu.concatenate %146, %149 in 0 : vector<1x128xf32>, vector<23x128xf32> -> vector<24x128xf32>
    %151 = tpu.concatenate %148, %150, %145 in 1 : vector<24x128xf32>, vector<24x128xf32>, vector<24x128xf32> -> vector<24x384xf32>
    %152 = arith.truncf %151 : vector<24x384xf32> to vector<24x384xbf16>
    %c0_67 = arith.constant 0 : index
    %c0_68 = arith.constant 0 : index
    %153 = vector.load %arg4[%c0_67, %c0_68] : memref<384x128xbf16, #tpu.memory_space<vmem>>, vector<384x128xbf16>
    %cst_69 = arith.constant dense<0.000000e+00> : vector<24x128xf32>
    %154 = tpu.matmul %152, %153, %cst_69 {dimension_numbers = #tpu.dot_dimension_numbers<[1], [0], [0], [1], [0, 0, 1, 1], [], []>} : vector<24x384xbf16>, vector<384x128xbf16>, vector<24x128xf32> -> vector<24x128xf32>
    %cst_70 = arith.constant 0.000000e+00 : f32
    %155 = vector.broadcast %cst_70 : f32 to vector<24x128xf32>
    %156 = arith.select %7, %154, %155 : vector<24x128xi1>, vector<24x128xf32>
    %cst_71 = arith.constant dense<0.000000e+00> : vector<128xf32>
    %157 = vector.multi_reduction <add>, %156, %cst_71 [0] : vector<24x128xf32> to vector<128xf32>
    %158 = vector.shape_cast %157 : vector<128xf32> to vector<1x128xf32>
    %159 = arith.mulf %156, %156 : vector<24x128xf32>
    %cst_72 = arith.constant dense<0.000000e+00> : vector<128xf32>
    %160 = vector.multi_reduction <add>, %159, %cst_72 [0] : vector<24x128xf32> to vector<128xf32>
    %161 = vector.shape_cast %160 : vector<128xf32> to vector<1x128xf32>
    %162 = tpu.concatenate %158, %161 in 0 : vector<1x128xf32>, vector<1x128xf32> -> vector<2x128xf32>
    %c0_73 = arith.constant 0 : index
    %c0_74 = arith.constant 0 : index
    %163 = vector.load %arg6[%c0_73, %c0_74] : memref<128x128xf32, #tpu.memory_space<vmem>>, vector<128x128xf32>
    %cst_75 = arith.constant dense<0.000000e+00> : vector<2x128xf32>
    %164 = tpu.matmul %162, %163, %cst_75 {dimension_numbers = #tpu.dot_dimension_numbers<[1], [0], [0], [1], [0, 0, 1, 1], [], []>} : vector<2x128xf32>, vector<128x128xf32>, vector<2x128xf32> -> vector<2x128xf32>
    %165 = vector.extract_strided_slice %164 {offsets = [0, 0], sizes = [1, 128], strides = [1, 1]} : vector<2x128xf32> to vector<1x128xf32>
    %cst_76 = arith.constant 0.00173611112 : f32
    %166 = vector.broadcast %cst_76 : f32 to vector<1x128xf32>
    %167 = arith.mulf %165, %166 : vector<1x128xf32>
    %168 = vector.extract_strided_slice %164 {offsets = [1, 0], sizes = [1, 128], strides = [1, 1]} : vector<2x128xf32> to vector<1x128xf32>
    %cst_77 = arith.constant 0.00173611112 : f32
    %169 = vector.broadcast %cst_77 : f32 to vector<1x128xf32>
    %170 = arith.mulf %168, %169 : vector<1x128xf32>
    %171 = arith.mulf %167, %167 : vector<1x128xf32>
    %172 = arith.subf %170, %171 : vector<1x128xf32>
    %cst_78 = arith.constant 9.99999974E-6 : f32
    %173 = vector.broadcast %cst_78 : f32 to vector<1x128xf32>
    %174 = arith.addf %172, %173 : vector<1x128xf32>
    %175 = math.rsqrt %174 : vector<1x128xf32>
    %c6_79 = arith.constant 6 : index
    %c0_80 = arith.constant 0 : index
    %176 = vector.load %arg5[%c6_79, %c0_80] : memref<8x128xf32, #tpu.memory_space<vmem>>, vector<1x128xf32>
    %c7_81 = arith.constant 7 : index
    %c0_82 = arith.constant 0 : index
    %177 = vector.load %arg5[%c7_81, %c0_82] : memref<8x128xf32, #tpu.memory_space<vmem>>, vector<1x128xf32>
    %178 = vector.broadcast %167 : vector<1x128xf32> to vector<24x128xf32>
    %179 = arith.subf %156, %178 : vector<24x128xf32>
    %180 = vector.broadcast %175 : vector<1x128xf32> to vector<24x128xf32>
    %181 = arith.mulf %179, %180 : vector<24x128xf32>
    %182 = vector.broadcast %176 : vector<1x128xf32> to vector<24x128xf32>
    %183 = arith.mulf %181, %182 : vector<24x128xf32>
    %184 = vector.broadcast %177 : vector<1x128xf32> to vector<24x128xf32>
    %185 = arith.addf %183, %184 : vector<24x128xf32>
    %cst_83 = arith.constant 0.000000e+00 : f32
    %186 = vector.broadcast %cst_83 : f32 to vector<24x128xf32>
    %187 = arith.maximumf %185, %186 : vector<24x128xf32>
    %cst_84 = arith.constant 0.000000e+00 : f32
    %188 = vector.broadcast %cst_84 : f32 to vector<24x128xf32>
    %189 = arith.select %7, %187, %188 : vector<24x128xi1>, vector<24x128xf32>
    %190 = arith.addf %189, %145 : vector<24x128xf32>
    %cst_85 = arith.constant 0.707106769 : f32
    %191 = vector.broadcast %cst_85 : f32 to vector<24x128xf32>
    %192 = arith.mulf %190, %191 : vector<24x128xf32>
    %193 = vector.shape_cast %192 : vector<24x128xf32> to vector<1x24x128xf32>
    %cst_86 = arith.constant dense<0.000000e+00> : vector<1xf32>
    %194 = vector.multi_reduction <add>, %193, %cst_86 [1, 2] : vector<1x24x128xf32> to vector<1xf32>
    %195 = vector.shape_cast %194 : vector<1xf32> to vector<1x1x1xf32>
    %196 = vector.extract %195[0, 0, 0] : f32 from vector<1x1x1xf32>
    %197 = arith.mulf %192, %192 : vector<24x128xf32>
    %198 = vector.shape_cast %197 : vector<24x128xf32> to vector<1x24x128xf32>
    %cst_87 = arith.constant dense<0.000000e+00> : vector<1xf32>
    %199 = vector.multi_reduction <add>, %198, %cst_87 [1, 2] : vector<1x24x128xf32> to vector<1xf32>
    %200 = vector.shape_cast %199 : vector<1xf32> to vector<1x1x1xf32>
    %201 = vector.extract %200[0, 0, 0] : f32 from vector<1x1x1xf32>
    %cst_88 = arith.constant 8.68055562E-4 : f32
    %202 = arith.mulf %196, %cst_88 : f32
    %cst_89 = arith.constant 8.68055562E-4 : f32
    %203 = arith.mulf %201, %cst_89 : f32
    %204 = arith.mulf %202, %202 : f32
    %205 = arith.subf %203, %204 : f32
    %cst_90 = arith.constant 9.99999974E-6 : f32
    %206 = arith.addf %205, %cst_90 : f32
    %207 = math.rsqrt %206 : f32
    %208 = vector.broadcast %202 : f32 to vector<24x128xf32>
    %209 = arith.subf %192, %208 : vector<24x128xf32>
    %210 = vector.broadcast %207 : f32 to vector<24x128xf32>
    %211 = arith.mulf %209, %210 : vector<24x128xf32>
    %c0_91 = arith.constant 0 : index
    %c0_92 = arith.constant 0 : index
    %212 = vector.load %arg7[%c0_91, %c0_92] : memref<24x128xf32, #tpu.memory_space<vmem>>, vector<24x128xf32>
    tpu.vector_store %arg7[%c0_91, %c0_92], %211 {strides = array<i32>} : memref<24x128xf32, #tpu.memory_space<vmem>>, vector<24x128xf32>,
    return
  }
}

</mosaic_0001>

<llo_original>
// kernel: _forward_impl.1
$region0: #{_forward_impl.1}
  #allocation0 [shape = 'u32[]', space=smem, size = 0x4, offset = 0x4, fixed_abs, tag = 'smem constant byte address 0x4 - core index']
  #allocation1 [shape = 'u32[72,128]{1,0:T(1,128)}', space=vmem, size = 0x9000, scoped, tag = 'internal scratch']
  #allocation2 [shape = 'f32[104,128]{1,0:T(8,128)}', space=vmem, size = 0xd000, scoped, tag = 'scratch operand']
  %s0 = inlined_call_operand.vmem [shape: bf16[80,128], index: 0, kind: input, shape index: {}]
  %s1 = inlined_call_operand.vmem [shape: bf16[128,128], index: 1, kind: input, shape index: {}]
  %s2 = inlined_call_operand.vmem [shape: bf16[1024,128], index: 2, kind: input, shape index: {}]
  %s3 = inlined_call_operand.vmem [shape: bf16[384,128], index: 3, kind: input, shape index: {}]
  %s4 = inlined_call_operand.vmem [shape: bf16[384,128], index: 4, kind: input, shape index: {}]
  %s5 = inlined_call_operand.vmem [shape: f32[8,128], index: 5, kind: input, shape index: {}]
  %s6 = inlined_call_operand.vmem [shape: f32[128,128], index: 6, kind: input, shape index: {}]
  %s7 = inlined_call_operand.vmem [shape: f32[24,128], index: 7, kind: output, shape index: {}]
  %s8 = sld [smem:[#allocation0]]
  $region38: #{_forward_impl.1} parent=0
    _
  %s10 = ssub.s32 1, %s8
  %s11 = scalar_select 0, %s10, %s8
  // Predicated region
  $region2: #{_forward_impl.1} parent=0 // pred_check
    _
  $region3: #{_forward_impl.1} parent=0 // pred_check_branch
    %13 = sbr.rel (0) target = $region5
  $region4: #{_forward_impl.1} parent=0 // pred_region
    _
  $region5: #{_forward_impl.1} parent=0 // pred_fallthru
    _
  // Predicated region
  $region6: #{_forward_impl.1} parent=0 // pred_check
    _
  $region7: #{_forward_impl.1} parent=0 // pred_check_branch
    %15 = sbr.rel (0) target = $region9
  $region8: #{_forward_impl.1} parent=0 // pred_region
    _
  $region9: #{_forward_impl.1} parent=0 // pred_fallthru
    _
  // Predicated region
  $region10: #{_forward_impl.1} parent=0 // pred_check
    _
  $region11: #{_forward_impl.1} parent=0 // pred_check_branch
    %17 = sbr.rel (0) target = $region13
  $region12: #{_forward_impl.1} parent=0 // pred_region
    _
  $region13: #{_forward_impl.1} parent=0 // pred_fallthru
    _
  // Predicated region
  $region14: #{_forward_impl.1} parent=0 // pred_check
    _
  $region15: #{_forward_impl.1} parent=0 // pred_check_branch
    %19 = sbr.rel (0) target = $region17
  $region16: #{_forward_impl.1} parent=0 // pred_region
    _
  $region17: #{_forward_impl.1} parent=0 // pred_fallthru
    _
  // Predicated region
  $region18: #{_forward_impl.1} parent=0 // pred_check
    _
  $region19: #{_forward_impl.1} parent=0 // pred_check_branch
    %21 = sbr.rel (0) target = $region21
  $region20: #{_forward_impl.1} parent=0 // pred_region
    _
  $region21: #{_forward_impl.1} parent=0 // pred_fallthru
    _
  // Predicated region
  $region22: #{_forward_impl.1} parent=0 // pred_check
    _
  $region23: #{_forward_impl.1} parent=0 // pred_check_branch
    %23 = sbr.rel (0) target = $region25
  $region24: #{_forward_impl.1} parent=0 // pred_region
    _
  $region25: #{_forward_impl.1} parent=0 // pred_fallthru
    _
  // Predicated region
  $region26: #{_forward_impl.1} parent=0 // pred_check
    _
  $region27: #{_forward_impl.1} parent=0 // pred_check_branch
    %25 = sbr.rel (0) target = $region29
  $region28: #{_forward_impl.1} parent=0 // pred_region
    _
  $region29: #{_forward_impl.1} parent=0 // pred_fallthru
    _
  %26 = vst [vmem:[#allocation2 + $0x50] sm:$0xff] 0.0
  %27 = vst [vmem:[#allocation2 + $0x58] sm:$0xff] 0.0
  %28 = vst [vmem:[#allocation2 + $0x60] sm:$0xff] 0.0
  %v29 = vlaneseq
  %v30 = vshrl.u32 %v29, 7
  %v31 = vadd.s32 %v30, 8
  %v32 = vadd.s32 %v30, 16
  %v33 = vadd.s32 %v30, 24
  %v34 = vadd.s32 %v30, 32
  %v35 = vadd.s32 %v30, 40
  %v36 = vadd.s32 %v30, 48
  %v37 = vadd.s32 %v30, 56
  %v38 = vadd.s32 %v30, 64
  %v39 = vadd.s32 %v30, 72
  %vm40 = vcmp.lt.s32.totalorder %v30, 79
  %vm41 = vcmp.lt.s32.totalorder %v31, 79
  %vm42 = vcmp.lt.s32.totalorder %v32, 79
  %vm43 = vcmp.lt.s32.totalorder %v33, 79
  %vm44 = vcmp.lt.s32.totalorder %v34, 79
  %vm45 = vcmp.lt.s32.totalorder %v35, 79
  %vm46 = vcmp.lt.s32.totalorder %v36, 79
  %vm47 = vcmp.lt.s32.totalorder %v37, 79
  %vm48 = vcmp.lt.s32.totalorder %v38, 79
  %vm49 = vcmp.lt.s32.totalorder %v39, 79
  %vm50 = vcmp.lt.s32.totalorder %v30, 18
  %vm51 = vcmp.lt.s32.totalorder %v31, 18
  %vm52 = vcmp.lt.s32.totalorder %v32, 18
  %v53 = vld [vmem:[%s0] sm:$0xf]
  %v54 = vld [vmem:[%s0 + $0x4] sm:$0xf]
  %v55 = vld [vmem:[%s0 + $0x8] sm:$0xf]
  %v56 = vld [vmem:[%s0 + $0xc] sm:$0xf]
  %v57 = vld [vmem:[%s0 + $0x10] sm:$0xf]
  %v58 = vld [vmem:[%s0 + $0x14] sm:$0xf]
  %v59 = vld [vmem:[%s0 + $0x18] sm:$0xf]
  %v60 = vld [vmem:[%s0 + $0x1c] sm:$0xf]
  %v61 = vld [vmem:[%s0 + $0x20] sm:$0xf]
  %v62 = vld [vmem:[%s0 + $0x24] sm:$0xf]
  %v63 = vld [vmem:[%s1] sm:$0xf]
  %v64 = vld [vmem:[%s1 + $0x4] sm:$0xf]
  %v65 = vld [vmem:[%s1 + $0x8] sm:$0xf]
  %v66 = vld [vmem:[%s1 + $0xc] sm:$0xf]
  %v67 = vld [vmem:[%s1 + $0x10] sm:$0xf]
  %v68 = vld [vmem:[%s1 + $0x14] sm:$0xf]
  %v69 = vld [vmem:[%s1 + $0x18] sm:$0xf]
  %v70 = vld [vmem:[%s1 + $0x1c] sm:$0xf]
  %v71 = vld [vmem:[%s1 + $0x20] sm:$0xf]
  %v72 = vld [vmem:[%s1 + $0x24] sm:$0xf]
  %v73 = vld [vmem:[%s1 + $0x28] sm:$0xf]
  %v74 = vld [vmem:[%s1 + $0x2c] sm:$0xf]
  %v75 = vld [vmem:[%s1 + $0x30] sm:$0xf]
  %v76 = vld [vmem:[%s1 + $0x34] sm:$0xf]
  %v77 = vld [vmem:[%s1 + $0x38] sm:$0xf]
  %v78 = vld [vmem:[%s1 + $0x3c] sm:$0xf]
  %v89 = vunpack.c.l.b16 %v53
  %v90 = vunpack.c.l.b16 %v54
  %v91 = vunpack.c.l.b16 %v55
  %v92 = vunpack.c.l.b16 %v56
  %v93 = vunpack.c.l.b16 %v57
  %v94 = vunpack.c.l.b16 %v58
  %v95 = vunpack.c.l.b16 %v59
  %v96 = vunpack.c.l.b16 %v60
  %v97 = vunpack.c.l.b16 %v61
  %v98 = vunpack.c.l.b16 %v62
  %v99 = vpack.c.b16 %v90, %v89
  %v100 = vpack.c.b16 %v92, %v91
  %v101 = vpack.c.b16 %v94, %v93
  %v102 = vpack.c.b16 %v96, %v95
  %v103 = vpack.c.b16 %v98, %v97
  %v125 = vunpack.c.l.b16 %v63
  %v126 = vunpack.c.l.b16 %v64
  %v127 = vunpack.c.l.b16 %v65
  %v128 = vunpack.c.l.b16 %v66
  %v129 = vunpack.c.l.b16 %v67
  %v130 = vunpack.c.l.b16 %v68
  %v131 = vunpack.c.l.b16 %v69
  %v132 = vunpack.c.l.b16 %v70
  %v133 = vunpack.c.l.b16 %v71
  %v134 = vunpack.c.l.b16 %v72
  %v135 = vunpack.c.l.b16 %v73
  %v136 = vunpack.c.l.b16 %v74
  %v137 = vunpack.c.l.b16 %v75
  %v138 = vunpack.c.l.b16 %v76
  %v139 = vunpack.c.l.b16 %v77
  %v140 = vunpack.c.l.b16 %v78
  %v141 = vpack.c.b16 %v126, %v125
  %v142 = vpack.c.b16 %v128, %v127
  %v143 = vpack.c.b16 %v130, %v129
  %v144 = vpack.c.b16 %v132, %v131
  %v145 = vpack.c.b16 %v134, %v133
  %v146 = vpack.c.b16 %v136, %v135
  %v147 = vpack.c.b16 %v138, %v137
  %v148 = vpack.c.b16 %v140, %v139
  %157 = vmatpush.bf16.msra.mxu0 %v148
  %158 = vmatpush.bf16.msra.mxu0 %v147
  %159 = vmatpush.bf16.msra.mxu0 %v146
  %160 = vmatpush.bf16.msra.mxu0 %v145
  %161 = vmatpush.bf16.msra.mxu0 %v144
  %162 = vmatpush.bf16.msra.mxu0 %v143
  %163 = vmatpush.bf16.msra.mxu0 %v142
  %164 = vmatpush.bf16.msra.mxu0 %v141
  %165 = vmatmul.bf16.gmra.mxu0 %v99
  %v166 = vpop.f32.mrf.mxu0
  %v167 = vadd.f32 0.0, %v166
  %v168 = vpop.f32.mrf.mxu0
  %v169 = vadd.f32 0.0, %v168
  %170 = vmatmul.bf16.gmra.mxu0 %v100
  %v171 = vpop.f32.mrf.mxu0
  %v172 = vadd.f32 0.0, %v171
  %v173 = vpop.f32.mrf.mxu0
  %v174 = vadd.f32 0.0, %v173
  %175 = vmatmul.bf16.gmra.mxu0 %v101
  %v176 = vpop.f32.mrf.mxu0
  %v177 = vadd.f32 0.0, %v176
  %v178 = vpop.f32.mrf.mxu0
  %v179 = vadd.f32 0.0, %v178
  %180 = vmatmul.bf16.gmra.mxu0 %v102
  %v181 = vpop.f32.mrf.mxu0
  %v182 = vadd.f32 0.0, %v181
  %v183 = vpop.f32.mrf.mxu0
  %v184 = vadd.f32 0.0, %v183
  %185 = vmatmul.bf16.gmra.mxu0 %v103
  %v186 = vpop.f32.mrf.mxu0
  %v187 = vadd.f32 0.0, %v186
  %v188 = vpop.f32.mrf.mxu0
  %v189 = vadd.f32 0.0, %v188
  %190 = vdwg.mxu0
  %v191 = vadd.f32 %v167, %v169
  %v192 = vadd.f32 %v191, %v172
  %v193 = vadd.f32 %v192, %v174
  %v194 = vadd.f32 %v193, %v177
  %v195 = vadd.f32 %v194, %v179
  %v196 = vadd.f32 %v195, %v182
  %v197 = vadd.f32 %v196, %v184
  %v198 = vadd.f32 %v197, %v187
  %v199 = vadd.f32 %v198, %v189
  %v200 = vrot.slane %v199, 4
  %v201 = vadd.f32 %v199, %v200
  %v202 = vrot.slane %v201, 2
  %v203 = vadd.f32 %v201, %v202
  %v204 = vrot.slane %v203, 1
  %v205 = vadd.f32 %v203, %v204
  %v206 = vmul.f32 %v167, %v167
  %v207 = vmul.f32 %v169, %v169
  %v208 = vmul.f32 %v172, %v172
  %v209 = vmul.f32 %v174, %v174
  %v210 = vmul.f32 %v177, %v177
  %v211 = vmul.f32 %v179, %v179
  %v212 = vmul.f32 %v182, %v182
  %v213 = vmul.f32 %v184, %v184
  %v214 = vmul.f32 %v187, %v187
  %v215 = vmul.f32 %v189, %v189
  %v216 = vadd.f32 %v206, %v207
  %v217 = vadd.f32 %v216, %v208
  %v218 = vadd.f32 %v217, %v209
  %v219 = vadd.f32 %v218, %v210
  %v220 = vadd.f32 %v219, %v211
  %v221 = vadd.f32 %v220, %v212
  %v222 = vadd.f32 %v221, %v213
  %v223 = vadd.f32 %v222, %v214
  %v224 = vadd.f32 %v223, %v215
  %v225 = vrot.slane %v224, 4
  %v226 = vadd.f32 %v224, %v225
  %v227 = vrot.slane %v226, 2
  %v228 = vadd.f32 %v226, %v227
  %v229 = vrot.slane %v228, 1
  %v230 = vadd.f32 %v228, %v229
  %vm231 = vcmask 1040384
  %v232 = vsel %vm231, %v205, %v230
  %v233 = vld [vmem:[%s6] sm:$0xff]
  %v234 = vld [vmem:[%s6 + $0x8] sm:$0xff]
  %v235 = vld [vmem:[%s6 + $0x10] sm:$0xff]
  %v236 = vld [vmem:[%s6 + $0x18] sm:$0xff]
  %v237 = vld [vmem:[%s6 + $0x20] sm:$0xff]
  %v238 = vld [vmem:[%s6 + $0x28] sm:$0xff]
  %v239 = vld [vmem:[%s6 + $0x30] sm:$0xff]
  %v240 = vld [vmem:[%s6 + $0x38] sm:$0xff]
  %v241 = vld [vmem:[%s6 + $0x40] sm:$0xff]
  %v242 = vld [vmem:[%s6 + $0x48] sm:$0xff]
  %v243 = vld [vmem:[%s6 + $0x50] sm:$0xff]
  %v244 = vld [vmem:[%s6 + $0x58] sm:$0xff]
  %v245 = vld [vmem:[%s6 + $0x60] sm:$0xff]
  %v246 = vld [vmem:[%s6 + $0x68] sm:$0xff]
  %v247 = vld [vmem:[%s6 + $0x70] sm:$0xff]
  %v248 = vld [vmem:[%s6 + $0x78] sm:$0xff]
  %249 = vmatpush.msra.mxu0 %v248
  %250 = vmatpush.msra.mxu0 %v247
  %251 = vmatpush.msra.mxu0 %v246
  %252 = vmatpush.msra.mxu0 %v245
  %253 = vmatpush.msra.mxu0 %v244
  %254 = vmatpush.msra.mxu0 %v243
  %255 = vmatpush.msra.mxu0 %v242
  %256 = vmatpush.msra.mxu0 %v241
  %257 = vmatpush.msra.mxu0 %v240
  %258 = vmatpush.msra.mxu0 %v239
  %259 = vmatpush.msra.mxu0 %v238
  %260 = vmatpush.msra.mxu0 %v237
  %261 = vmatpush.msra.mxu0 %v236
  %262 = vmatpush.msra.mxu0 %v235
  %263 = vmatpush.msra.mxu0 %v234
  %264 = vmatpush.msra.mxu0 %v233
  %265 = vmatmul.f32.gmra.mxu0 %v232
  %v266 = vpop.f32.mrf.mxu0
  %v267 = vadd.f32 0.0, %v266
  %268 = vdwg.mxu0
  %v269 = vmul.f32 %v267, 0.00039556963
  %v270 = vmul.f32 %v269, %v269
  %v272 = vrot.slane %v270, 7
  %v274 = vsub.f32 %v269, %v272
  %v275 = vadd.f32 %v274, 1e-05
  %v276 = vrsqrt.pop %v275
  %v277 = vmul.f32 %v276, %v275
  %v278 = vmul.f32 %v277, %v276
  %v279 = vmul.f32 0.5, %v278
  %v280 = vsub.f32 1.5, %v279
  %v281 = vmul.f32 %v276, %v280
  %vm282 = vweird.f32 %v275
  %vm283 = vweird.f32 %v276
  %vm284 = vmor %vm282, %vm283
  %v285 = vsel %vm284, %v276, %v281
  %v286 = vld [vmem:[%s5] sm:$0x1]
  %v287 = vld [vmem:[%s5 + $0x1] sm:$0x1]
  %v288 = vperm.slane %v269, 0
  %v289 = vsub.f32 %v167, %v288
  %v290 = vsub.f32 %v169, %v288
  %v291 = vsub.f32 %v172, %v288
  %v292 = vsub.f32 %v174, %v288
  %v293 = vsub.f32 %v177, %v288
  %v294 = vsub.f32 %v179, %v288
  %v295 = vsub.f32 %v182, %v288
  %v296 = vsub.f32 %v184, %v288
  %v297 = vsub.f32 %v187, %v288
  %v298 = vsub.f32 %v189, %v288
  %v299 = vperm.slane %v285, 1
  %v300 = vmul.f32 %v289, %v299
  %v301 = vmul.f32 %v290, %v299
  %v302 = vmul.f32 %v291, %v299
  %v303 = vmul.f32 %v292, %v299
  %v304 = vmul.f32 %v293, %v299
  %v305 = vmul.f32 %v294, %v299
  %v306 = vmul.f32 %v295, %v299
  %v307 = vmul.f32 %v296, %v299
  %v308 = vmul.f32 %v297, %v299
  %v309 = vmul.f32 %v298, %v299
  %v310 = vperm.slane %v286, 0
  %v311 = vmul.f32 %v300, %v310
  %v312 = vmul.f32 %v301, %v310
  %v313 = vmul.f32 %v302, %v310
  %v314 = vmul.f32 %v303, %v310
  %v315 = vmul.f32 %v304, %v310
  %v316 = vmul.f32 %v305, %v310
  %v317 = vmul.f32 %v306, %v310
  %v318 = vmul.f32 %v307, %v310
  %v319 = vmul.f32 %v308, %v310
  %v320 = vmul.f32 %v309, %v310
  %v321 = vperm.slane %v287, 0
  %v322 = vadd.f32 %v311, %v321
  %v323 = vadd.f32 %v312, %v321
  %v324 = vadd.f32 %v313, %v321
  %v325 = vadd.f32 %v314, %v321
  %v326 = vadd.f32 %v315, %v321
  %v327 = vadd.f32 %v316, %v321
  %v328 = vadd.f32 %v317, %v321
  %v329 = vadd.f32 %v318, %v321
  %v330 = vadd.f32 %v319, %v321
  %v331 = vadd.f32 %v320, %v321
  %v332 = vmax.f32 %v322, 0.0
  %v333 = vmax.f32 %v323, 0.0
  %v334 = vmax.f32 %v324, 0.0
  %v335 = vmax.f32 %v325, 0.0
  %v336 = vmax.f32 %v326, 0.0
  %v337 = vmax.f32 %v327, 0.0
  %v338 = vmax.f32 %v328, 0.0
  %v339 = vmax.f32 %v329, 0.0
  %v340 = vmax.f32 %v330, 0.0
  %v341 = vmax.f32 %v331, 0.0
  %v342 = vsel %vm40, %v332, 0.0
  %v343 = vsel %vm41, %v333, 0.0
  %v344 = vsel %vm42, %v334, 0.0
  %v345 = vsel %vm43, %v335, 0.0
  %v346 = vsel %vm44, %v336, 0.0
  %v347 = vsel %vm45, %v337, 0.0
  %v348 = vsel %vm46, %v338, 0.0
  %v349 = vsel %vm47, %v339, 0.0
  %v350 = vsel %vm48, %v340, 0.0
  %v351 = vsel %vm49, %v341, 0.0
  %352 = vst [vmem:[#allocation2] sm:$0xff] %v342
  %353 = vst [vmem:[#allocation2 + $0x8] sm:$0xff] %v343
  %354 = vst [vmem:[#allocation2 + $0x10] sm:$0xff] %v344
  %355 = vst [vmem:[#allocation2 + $0x18] sm:$0xff] %v345
  %356 = vst [vmem:[#allocation2 + $0x20] sm:$0xff] %v346
  %357 = vst [vmem:[#allocation2 + $0x28] sm:$0xff] %v347
  %358 = vst [vmem:[#allocation2 + $0x30] sm:$0xff] %v348
  %359 = vst [vmem:[#allocation2 + $0x38] sm:$0xff] %v349
  %360 = vst [vmem:[#allocation2 + $0x40] sm:$0xff] %v350
  %361 = vst [vmem:[#allocation2 + $0x48] sm:$0xff] %v351
  %v362 = vld [vmem:[#allocation2] ss:$4 sm:$0xff]
  %s363 = scalar_lea.vmem [#allocation2], 32
  %v364 = vld [vmem:[%s363] ss:$4 sm:$0xff]
  %s365 = scalar_lea.vmem [#allocation2], 64
  %v366 = vld [vmem:[%s365] ss:$4 sm:$0xff]
  %v367 = vpack.c.bf16 %v362, %v362
  %v368 = vpack.c.bf16 %v364, %v364
  %v369 = vpack.c.bf16 %v366, %v366
  %s370 = scalar_lea.vmem [#allocation2], 1
  %v371 = vld [vmem:[%s370] ss:$4 sm:$0xff]
  %s372 = scalar_lea.vmem [#allocation2], 33
  %v373 = vld [vmem:[%s372] ss:$4 sm:$0xff]
  %s374 = scalar_lea.vmem [#allocation2], 65
  %v375 = vld [vmem:[%s374] ss:$4 sm:$0xff]
  %v376 = vpack.c.bf16 %v371, %v371
  %v377 = vpack.c.bf16 %v373, %v373
  %v378 = vpack.c.bf16 %v375, %v375
  %s379 = scalar_lea.vmem [#allocation2], 2
  %v380 = vld [vmem:[%s379] ss:$4 sm:$0xff]
  %s381 = scalar_lea.vmem [#allocation2], 34
  %v382 = vld [vmem:[%s381] ss:$4 sm:$0xff]
  %s383 = scalar_lea.vmem [#allocation2], 66
  %v384 = vld [vmem:[%s383] ss:$4 sm:$0xff]
  %v385 = vpack.c.bf16 %v380, %v380
  %v386 = vpack.c.bf16 %v382, %v382
  %v387 = vpack.c.bf16 %v384, %v384
  %s388 = scalar_lea.vmem [#allocation2], 3
  %v389 = vld [vmem:[%s388] ss:$4 sm:$0xff]
  %s390 = scalar_lea.vmem [#allocation2], 35
  %v391 = vld [vmem:[%s390] ss:$4 sm:$0xff]
  %s392 = scalar_lea.vmem [#allocation2], 67
  %v393 = vld [vmem:[%s392] ss:$4 sm:$0xff]
  %v394 = vpack.c.bf16 %v389, %v389
  %v395 = vpack.c.bf16 %v391, %v391
  %v396 = vpack.c.bf16 %v393, %v393
  %s397 = scalar_lea.vmem [#allocation2], 4
  %v398 = vld [vmem:[%s397] ss:$4 sm:$0xff]
  %s399 = scalar_lea.vmem [#allocation2], 36
  %v400 = vld [vmem:[%s399] ss:$4 sm:$0xff]
  %s401 = scalar_lea.vmem [#allocation2], 68
  %v402 = vld [vmem:[%s401] ss:$4 sm:$0xff]
  %v403 = vpack.c.bf16 %v398, %v398
  %v404 = vpack.c.bf16 %v400, %v400
  %v405 = vpack.c.bf16 %v402, %v402
  %s406 = scalar_lea.vmem [#allocation2], 5
  %v407 = vld [vmem:[%s406] ss:$4 sm:$0xff]
  %s408 = scalar_lea.vmem [#allocation2], 37
  %v409 = vld [vmem:[%s408] ss:$4 sm:$0xff]
  %s410 = scalar_lea.vmem [#allocation2], 69
  %v411 = vld [vmem:[%s410] ss:$4 sm:$0xff]
  %v412 = vpack.c.bf16 %v407, %v407
  %v413 = vpack.c.bf16 %v409, %v409
  %v414 = vpack.c.bf16 %v411, %v411
  %s415 = scalar_lea.vmem [#allocation2], 6
  %v416 = vld [vmem:[%s415] ss:$4 sm:$0xff]
  %s417 = scalar_lea.vmem [#allocation2], 38
  %v418 = vld [vmem:[%s417] ss:$4 sm:$0xff]
  %s419 = scalar_lea.vmem [#allocation2], 70
  %v420 = vld [vmem:[%s419] ss:$4 sm:$0xff]
  %v421 = vpack.c.bf16 %v416, %v416
  %v422 = vpack.c.bf16 %v418, %v418
  %v423 = vpack.c.bf16 %v420, %v420
  %s424 = scalar_lea.vmem [#allocation2], 7
  %v425 = vld [vmem:[%s424] ss:$4 sm:$0xff]
  %s426 = scalar_lea.vmem [#allocation2], 39
  %v427 = vld [vmem:[%s426] ss:$4 sm:$0xff]
  %s428 = scalar_lea.vmem [#allocation2], 71
  %v429 = vld [vmem:[%s428] ss:$4 sm:$0xff]
  %v430 = vpack.c.bf16 %v425, %v425
  %v431 = vpack.c.bf16 %v427, %v427
  %v432 = vpack.c.bf16 %v429, %v429
  %v436 = vunpack.c.l.b16 %v367
  %v437 = vunpack.c.l.b16 %v368
  %v438 = vunpack.c.l.b16 %v369
  %v439 = vpack.c.b16 %v437, %v436
  %v440 = vpack.c.b16 %v438, %v438
  %v446 = vunpack.c.l.b16 %v376
  %v447 = vunpack.c.l.b16 %v377
  %v448 = vunpack.c.l.b16 %v378
  %v449 = vpack.c.b16 %v447, %v446
  %v450 = vpack.c.b16 %v448, %v448
  %v456 = vunpack.c.l.b16 %v385
  %v457 = vunpack.c.l.b16 %v386
  %v458 = vunpack.c.l.b16 %v387
  %v459 = vpack.c.b16 %v457, %v456
  %v460 = vpack.c.b16 %v458, %v458
  %v466 = vunpack.c.l.b16 %v394
  %v467 = vunpack.c.l.b16 %v395
  %v468 = vunpack.c.l.b16 %v396
  %v469 = vpack.c.b16 %v467, %v466
  %v470 = vpack.c.b16 %v468, %v468
  %v476 = vunpack.c.l.b16 %v403
  %v477 = vunpack.c.l.b16 %v404
  %v478 = vunpack.c.l.b16 %v405
  %v479 = vpack.c.b16 %v477, %v476
  %v480 = vpack.c.b16 %v478, %v478
  %v486 = vunpack.c.l.b16 %v412
  %v487 = vunpack.c.l.b16 %v413
  %v488 = vunpack.c.l.b16 %v414
  %v489 = vpack.c.b16 %v487, %v486
  %v490 = vpack.c.b16 %v488, %v488
  %v496 = vunpack.c.l.b16 %v421
  %v497 = vunpack.c.l.b16 %v422
  %v498 = vunpack.c.l.b16 %v423
  %v499 = vpack.c.b16 %v497, %v496
  %v500 = vpack.c.b16 %v498, %v498
  %v506 = vunpack.c.l.b16 %v430
  %v507 = vunpack.c.l.b16 %v431
  %v508 = vunpack.c.l.b16 %v432
  %v509 = vpack.c.b16 %v507, %v506
  %v510 = vpack.c.b16 %v508, %v508
  %v513 = vld [vmem:[%s2] sm:$0xf]
  %v514 = vld [vmem:[%s2 + $0x4] sm:$0xf]
  %v515 = vld [vmem:[%s2 + $0x8] sm:$0xf]
  %v516 = vld [vmem:[%s2 + $0xc] sm:$0xf]
  %v517 = vld [vmem:[%s2 + $0x10] sm:$0xf]
  %v518 = vld [vmem:[%s2 + $0x14] sm:$0xf]
  %v519 = vld [vmem:[%s2 + $0x18] sm:$0xf]
  %v520 = vld [vmem:[%s2 + $0x1c] sm:$0xf]
  %v521 = vld [vmem:[%s2 + $0x20] sm:$0xf]
  %v522 = vld [vmem:[%s2 + $0x24] sm:$0xf]
  %v523 = vld [vmem:[%s2 + $0x28] sm:$0xf]
  %v524 = vld [vmem:[%s2 + $0x2c] sm:$0xf]
  %v525 = vld [vmem:[%s2 + $0x30] sm:$0xf]
  %v526 = vld [vmem:[%s2 + $0x34] sm:$0xf]
  %v527 = vld [vmem:[%s2 + $0x38] sm:$0xf]
  %v528 = vld [vmem:[%s2 + $0x3c] sm:$0xf]
  %v529 = vld [vmem:[%s2 + $0x40] sm:$0xf]
  %v530 = vld [vmem:[%s2 + $0x44] sm:$0xf]
  %v531 = vld [vmem:[%s2 + $0x48] sm:$0xf]
  %v532 = vld [vmem:[%s2 + $0x4c] sm:$0xf]
  %v533 = vld [vmem:[%s2 + $0x50] sm:$0xf]
  %v534 = vld [vmem:[%s2 + $0x54] sm:$0xf]
  %v535 = vld [vmem:[%s2 + $0x58] sm:$0xf]
  %v536 = vld [vmem:[%s2 + $0x5c] sm:$0xf]
  %v537 = vld [vmem:[%s2 + $0x60] sm:$0xf]
  %v538 = vld [vmem:[%s2 + $0x64] sm:$0xf]
  %v539 = vld [vmem:[%s2 + $0x68] sm:$0xf]
  %v540 = vld [vmem:[%s2 + $0x6c] sm:$0xf]
  %v541 = vld [vmem:[%s2 + $0x70] sm:$0xf]
  %v542 = vld [vmem:[%s2 + $0x74] sm:$0xf]
  %v543 = vld [vmem:[%s2 + $0x78] sm:$0xf]
  %v544 = vld [vmem:[%s2 + $0x7c] sm:$0xf]
  %v545 = vld [vmem:[%s2 + $0x80] sm:$0xf]
  %v546 = vld [vmem:[%s2 + $0x84] sm:$0xf]
  %v547 = vld [vmem:[%s2 + $0x88] sm:$0xf]
  %v548 = vld [vmem:[%s2 + $0x8c] sm:$0xf]
  %v549 = vld [vmem:[%s2 + $0x90] sm:$0xf]
  %v550 = vld [vmem:[%s2 + $0x94] sm:$0xf]
  %v551 = vld [vmem:[%s2 + $0x98] sm:$0xf]
  %v552 = vld [vmem:[%s2 + $0x9c] sm:$0xf]
  %v553 = vld [vmem:[%s2 + $0xa0] sm:$0xf]
  %v554 = vld [vmem:[%s2 + $0xa4] sm:$0xf]
  %v555 = vld [vmem:[%s2 + $0xa8] sm:$0xf]
  %v556 = vld [vmem:[%s2 + $0xac] sm:$0xf]
  %v557 = vld [vmem:[%s2 + $0xb0] sm:$0xf]
  %v558 = vld [vmem:[%s2 + $0xb4] sm:$0xf]
  %v559 = vld [vmem:[%s2 + $0xb8] sm:$0xf]
  %v560 = vld [vmem:[%s2 + $0xbc] sm:$0xf]
  %v561 = vld [vmem:[%s2 + $0xc0] sm:$0xf]
  %v562 = vld [vmem:[%s2 + $0xc4] sm:$0xf]
  %v563 = vld [vmem:[%s2 + $0xc8] sm:$0xf]
  %v564 = vld [vmem:[%s2 + $0xcc] sm:$0xf]
  %v565 = vld [vmem:[%s2 + $0xd0] sm:$0xf]
  %v566 = vld [vmem:[%s2 + $0xd4] sm:$0xf]
  %v567 = vld [vmem:[%s2 + $0xd8] sm:$0xf]
  %v568 = vld [vmem:[%s2 + $0xdc] sm:$0xf]
  %v569 = vld [vmem:[%s2 + $0xe0] sm:$0xf]
  %v570 = vld [vmem:[%s2 + $0xe4] sm:$0xf]
  %v571 = vld [vmem:[%s2 + $0xe8] sm:$0xf]
  %v572 = vld [vmem:[%s2 + $0xec] sm:$0xf]
  %v573 = vld [vmem:[%s2 + $0xf0] sm:$0xf]
  %v574 = vld [vmem:[%s2 + $0xf4] sm:$0xf]
  %v575 = vld [vmem:[%s2 + $0xf8] sm:$0xf]
  %v576 = vld [vmem:[%s2 + $0xfc] sm:$0xf]
  %v577 = vld [vmem:[%s2 + $0x100] sm:$0xf]
  %v578 = vld [vmem:[%s2 + $0x104] sm:$0xf]
  %v579 = vld [vmem:[%s2 + $0x108] sm:$0xf]
  %v580 = vld [vmem:[%s2 + $0x10c] sm:$0xf]
  %v581 = vld [vmem:[%s2 + $0x110] sm:$0xf]
  %v582 = vld [vmem:[%s2 + $0x114] sm:$0xf]
  %v583 = vld [vmem:[%s2 + $0x118] sm:$0xf]
  %v584 = vld [vmem:[%s2 + $0x11c] sm:$0xf]
  %v585 = vld [vmem:[%s2 + $0x120] sm:$0xf]
  %v586 = vld [vmem:[%s2 + $0x124] sm:$0xf]
  %v587 = vld [vmem:[%s2 + $0x128] sm:$0xf]
  %v588 = vld [vmem:[%s2 + $0x12c] sm:$0xf]
  %v589 = vld [vmem:[%s2 + $0x130] sm:$0xf]
  %v590 = vld [vmem:[%s2 + $0x134] sm:$0xf]
  %v591 = vld [vmem:[%s2 + $0x138] sm:$0xf]
  %v592 = vld [vmem:[%s2 + $0x13c] sm:$0xf]
  %v593 = vld [vmem:[%s2 + $0x140] sm:$0xf]
  %v594 = vld [vmem:[%s2 + $0x144] sm:$0xf]
  %v595 = vld [vmem:[%s2 + $0x148] sm:$0xf]
  %v596 = vld [vmem:[%s2 + $0x14c] sm:$0xf]
  %v597 = vld [vmem:[%s2 + $0x150] sm:$0xf]
  %v598 = vld [vmem:[%s2 + $0x154] sm:$0xf]
  %v599 = vld [vmem:[%s2 + $0x158] sm:$0xf]
  %v600 = vld [vmem:[%s2 + $0x15c] sm:$0xf]
  %v601 = vld [vmem:[%s2 + $0x160] sm:$0xf]
  %v602 = vld [vmem:[%s2 + $0x164] sm:$0xf]
  %v603 = vld [vmem:[%s2 + $0x168] sm:$0xf]
  %v604 = vld [vmem:[%s2 + $0x16c] sm:$0xf]
  %v605 = vld [vmem:[%s2 + $0x170] sm:$0xf]
  %v606 = vld [vmem:[%s2 + $0x174] sm:$0xf]
  %v607 = vld [vmem:[%s2 + $0x178] sm:$0xf]
  %v608 = vld [vmem:[%s2 + $0x17c] sm:$0xf]
  %v609 = vld [vmem:[%s2 + $0x180] sm:$0xf]
  %v610 = vld [vmem:[%s2 + $0x184] sm:$0xf]
  %v611 = vld [vmem:[%s2 + $0x188] sm:$0xf]
  %v612 = vld [vmem:[%s2 + $0x18c] sm:$0xf]
  %v613 = vld [vmem:[%s2 + $0x190] sm:$0xf]
  %v614 = vld [vmem:[%s2 + $0x194] sm:$0xf]
  %v615 = vld [vmem:[%s2 + $0x198] sm:$0xf]
  %v616 = vld [vmem:[%s2 + $0x19c] sm:$0xf]
  %v617 = vld [vmem:[%s2 + $0x1a0] sm:$0xf]
  %v618 = vld [vmem:[%s2 + $0x1a4] sm:$0xf]
  %v619 = vld [vmem:[%s2 + $0x1a8] sm:$0xf]
  %v620 = vld [vmem:[%s2 + $0x1ac] sm:$0xf]
  %v621 = vld [vmem:[%s2 + $0x1b0] sm:$0xf]
  %v622 = vld [vmem:[%s2 + $0x1b4] sm:$0xf]
  %v623 = vld [vmem:[%s2 + $0x1b8] sm:$0xf]
  %v624 = vld [vmem:[%s2 + $0x1bc] sm:$0xf]
  %v625 = vld [vmem:[%s2 + $0x1c0] sm:$0xf]
  %v626 = vld [vmem:[%s2 + $0x1c4] sm:$0xf]
  %v627 = vld [vmem:[%s2 + $0x1c8] sm:$0xf]
  %v628 = vld [vmem:[%s2 + $0x1cc] sm:$0xf]
  %v629 = vld [vmem:[%s2 + $0x1d0] sm:$0xf]
  %v630 = vld [vmem:[%s2 + $0x1d4] sm:$0xf]
  %v631 = vld [vmem:[%s2 + $0x1d8] sm:$0xf]
  %v632 = vld [vmem:[%s2 + $0x1dc] sm:$0xf]
  %v633 = vld [vmem:[%s2 + $0x1e0] sm:$0xf]
  %v634 = vld [vmem:[%s2 + $0x1e4] sm:$0xf]
  %v635 = vld [vmem:[%s2 + $0x1e8] sm:$0xf]
  %v636 = vld [vmem:[%s2 + $0x1ec] sm:$0xf]
  %v637 = vld [vmem:[%s2 + $0x1f0] sm:$0xf]
  %v638 = vld [vmem:[%s2 + $0x1f4] sm:$0xf]
  %v639 = vld [vmem:[%s2 + $0x1f8] sm:$0xf]
  %v640 = vld [vmem:[%s2 + $0x1fc] sm:$0xf]
  %v769 = vunpack.c.l.b16 %v513
  %v770 = vunpack.c.l.b16 %v514
  %v771 = vunpack.c.l.b16 %v515
  %v772 = vunpack.c.l.b16 %v516
  %v773 = vunpack.c.l.b16 %v517
  %v774 = vunpack.c.l.b16 %v518
  %v775 = vunpack.c.l.b16 %v519
  %v776 = vunpack.c.l.b16 %v520
  %v777 = vunpack.c.l.b16 %v521
  %v778 = vunpack.c.l.b16 %v522
  %v779 = vunpack.c.l.b16 %v523
  %v780 = vunpack.c.l.b16 %v524
  %v781 = vunpack.c.l.b16 %v525
  %v782 = vunpack.c.l.b16 %v526
  %v783 = vunpack.c.l.b16 %v527
  %v784 = vunpack.c.l.b16 %v528
  %v785 = vunpack.c.l.b16 %v529
  %v786 = vunpack.c.l.b16 %v530
  %v787 = vunpack.c.l.b16 %v531
  %v788 = vunpack.c.l.b16 %v532
  %v789 = vunpack.c.l.b16 %v533
  %v790 = vunpack.c.l.b16 %v534
  %v791 = vunpack.c.l.b16 %v535
  %v792 = vunpack.c.l.b16 %v536
  %v793 = vunpack.c.l.b16 %v537
  %v794 = vunpack.c.l.b16 %v538
  %v795 = vunpack.c.l.b16 %v539
  %v796 = vunpack.c.l.b16 %v540
  %v797 = vunpack.c.l.b16 %v541
  %v798 = vunpack.c.l.b16 %v542
  %v799 = vunpack.c.l.b16 %v543
  %v800 = vunpack.c.l.b16 %v544
  %v801 = vunpack.c.l.b16 %v545
  %v802 = vunpack.c.l.b16 %v546
  %v803 = vunpack.c.l.b16 %v547
  %v804 = vunpack.c.l.b16 %v548
  %v805 = vunpack.c.l.b16 %v549
  %v806 = vunpack.c.l.b16 %v550
  %v807 = vunpack.c.l.b16 %v551
  %v808 = vunpack.c.l.b16 %v552
  %v809 = vunpack.c.l.b16 %v553
  %v810 = vunpack.c.l.b16 %v554
  %v811 = vunpack.c.l.b16 %v555
  %v812 = vunpack.c.l.b16 %v556
  %v813 = vunpack.c.l.b16 %v557
  %v814 = vunpack.c.l.b16 %v558
  %v815 = vunpack.c.l.b16 %v559
  %v816 = vunpack.c.l.b16 %v560
  %v817 = vunpack.c.l.b16 %v561
  %v818 = vunpack.c.l.b16 %v562
  %v819 = vunpack.c.l.b16 %v563
  %v820 = vunpack.c.l.b16 %v564
  %v821 = vunpack.c.l.b16 %v565
  %v822 = vunpack.c.l.b16 %v566
  %v823 = vunpack.c.l.b16 %v567
  %v824 = vunpack.c.l.b16 %v568
  %v825 = vunpack.c.l.b16 %v569
  %v826 = vunpack.c.l.b16 %v570
  %v827 = vunpack.c.l.b16 %v571
  %v828 = vunpack.c.l.b16 %v572
  %v829 = vunpack.c.l.b16 %v573
  %v830 = vunpack.c.l.b16 %v574
  %v831 = vunpack.c.l.b16 %v575
  %v832 = vunpack.c.l.b16 %v576
  %v833 = vunpack.c.l.b16 %v577
  %v834 = vunpack.c.l.b16 %v578
  %v835 = vunpack.c.l.b16 %v579
  %v836 = vunpack.c.l.b16 %v580
  %v837 = vunpack.c.l.b16 %v581
  %v838 = vunpack.c.l.b16 %v582
  %v839 = vunpack.c.l.b16 %v583
  %v840 = vunpack.c.l.b16 %v584
  %v841 = vunpack.c.l.b16 %v585
  %v842 = vunpack.c.l.b16 %v586
  %v843 = vunpack.c.l.b16 %v587
  %v844 = vunpack.c.l.b16 %v588
  %v845 = vunpack.c.l.b16 %v589
  %v846 = vunpack.c.l.b16 %v590
  %v847 = vunpack.c.l.b16 %v591
  %v848 = vunpack.c.l.b16 %v592
  %v849 = vunpack.c.l.b16 %v593
  %v850 = vunpack.c.l.b16 %v594
  %v851 = vunpack.c.l.b16 %v595
  %v852 = vunpack.c.l.b16 %v596
  %v853 = vunpack.c.l.b16 %v597
  %v854 = vunpack.c.l.b16 %v598
  %v855 = vunpack.c.l.b16 %v599
  %v856 = vunpack.c.l.b16 %v600
  %v857 = vunpack.c.l.b16 %v601
  %v858 = vunpack.c.l.b16 %v602
  %v859 = vunpack.c.l.b16 %v603
  %v860 = vunpack.c.l.b16 %v604
  %v861 = vunpack.c.l.b16 %v605
  %v862 = vunpack.c.l.b16 %v606
  %v863 = vunpack.c.l.b16 %v607
  %v864 = vunpack.c.l.b16 %v608
  %v865 = vunpack.c.l.b16 %v609
  %v866 = vunpack.c.l.b16 %v610
  %v867 = vunpack.c.l.b16 %v611
  %v868 = vunpack.c.l.b16 %v612
  %v869 = vunpack.c.l.b16 %v613
  %v870 = vunpack.c.l.b16 %v614
  %v871 = vunpack.c.l.b16 %v615
  %v872 = vunpack.c.l.b16 %v616
  %v873 = vunpack.c.l.b16 %v617
  %v874 = vunpack.c.l.b16 %v618
  %v875 = vunpack.c.l.b16 %v619
  %v876 = vunpack.c.l.b16 %v620
  %v877 = vunpack.c.l.b16 %v621
  %v878 = vunpack.c.l.b16 %v622
  %v879 = vunpack.c.l.b16 %v623
  %v880 = vunpack.c.l.b16 %v624
  %v881 = vunpack.c.l.b16 %v625
  %v882 = vunpack.c.l.b16 %v626
  %v883 = vunpack.c.l.b16 %v627
  %v884 = vunpack.c.l.b16 %v628
  %v885 = vunpack.c.l.b16 %v629
  %v886 = vunpack.c.l.b16 %v630
  %v887 = vunpack.c.l.b16 %v631
  %v888 = vunpack.c.l.b16 %v632
  %v889 = vunpack.c.l.b16 %v633
  %v890 = vunpack.c.l.b16 %v634
  %v891 = vunpack.c.l.b16 %v635
  %v892 = vunpack.c.l.b16 %v636
  %v893 = vunpack.c.l.b16 %v637
  %v894 = vunpack.c.l.b16 %v638
  %v895 = vunpack.c.l.b16 %v639
  %v896 = vunpack.c.l.b16 %v640
  %v897 = vpack.c.b16 %v770, %v769
  %v898 = vpack.c.b16 %v772, %v771
  %v899 = vpack.c.b16 %v774, %v773
  %v900 = vpack.c.b16 %v776, %v775
  %v901 = vpack.c.b16 %v778, %v777
  %v902 = vpack.c.b16 %v780, %v779
  %v903 = vpack.c.b16 %v782, %v781
  %v904 = vpack.c.b16 %v784, %v783
  %v905 = vpack.c.b16 %v786, %v785
  %v906 = vpack.c.b16 %v788, %v787
  %v907 = vpack.c.b16 %v790, %v789
  %v908 = vpack.c.b16 %v792, %v791
  %v909 = vpack.c.b16 %v794, %v793
  %v910 = vpack.c.b16 %v796, %v795
  %v911 = vpack.c.b16 %v798, %v797
  %v912 = vpack.c.b16 %v800, %v799
  %v913 = vpack.c.b16 %v802, %v801
  %v914 = vpack.c.b16 %v804, %v803
  %v915 = vpack.c.b16 %v806, %v805
  %v916 = vpack.c.b16 %v808, %v807
  %v917 = vpack.c.b16 %v810, %v809
  %v918 = vpack.c.b16 %v812, %v811
  %v919 = vpack.c.b16 %v814, %v813
  %v920 = vpack.c.b16 %v816, %v815
  %v921 = vpack.c.b16 %v818, %v817
  %v922 = vpack.c.b16 %v820, %v819
  %v923 = vpack.c.b16 %v822, %v821
  %v924 = vpack.c.b16 %v824, %v823
  %v925 = vpack.c.b16 %v826, %v825
  %v926 = vpack.c.b16 %v828, %v827
  %v927 = vpack.c.b16 %v830, %v829
  %v928 = vpack.c.b16 %v832, %v831
  %v929 = vpack.c.b16 %v834, %v833
  %v930 = vpack.c.b16 %v836, %v835
  %v931 = vpack.c.b16 %v838, %v837
  %v932 = vpack.c.b16 %v840, %v839
  %v933 = vpack.c.b16 %v842, %v841
  %v934 = vpack.c.b16 %v844, %v843
  %v935 = vpack.c.b16 %v846, %v845
  %v936 = vpack.c.b16 %v848, %v847
  %v937 = vpack.c.b16 %v850, %v849
  %v938 = vpack.c.b16 %v852, %v851
  %v939 = vpack.c.b16 %v854, %v853
  %v940 = vpack.c.b16 %v856, %v855
  %v941 = vpack.c.b16 %v858, %v857
  %v942 = vpack.c.b16 %v860, %v859
  %v943 = vpack.c.b16 %v862, %v861
  %v944 = vpack.c.b16 %v864, %v863
  %v945 = vpack.c.b16 %v866, %v865
  %v946 = vpack.c.b16 %v868, %v867
  %v947 = vpack.c.b16 %v870, %v869
  %v948 = vpack.c.b16 %v872, %v871
  %v949 = vpack.c.b16 %v874, %v873
  %v950 = vpack.c.b16 %v876, %v875
  %v951 = vpack.c.b16 %v878, %v877
  %v952 = vpack.c.b16 %v880, %v879
  %v953 = vpack.c.b16 %v882, %v881
  %v954 = vpack.c.b16 %v884, %v883
  %v955 = vpack.c.b16 %v886, %v885
  %v956 = vpack.c.b16 %v888, %v887
  %v957 = vpack.c.b16 %v890, %v889
  %v958 = vpack.c.b16 %v892, %v891
  %v959 = vpack.c.b16 %v894, %v893
  %v960 = vpack.c.b16 %v896, %v895
  %1025 = vmatpush.bf16.msra.mxu0 %v904
  %1026 = vmatpush.bf16.msra.mxu0 %v903
  %1027 = vmatpush.bf16.msra.mxu0 %v902
  %1028 = vmatpush.bf16.msra.mxu0 %v901
  %1029 = vmatpush.bf16.msra.mxu0 %v900
  %1030 = vmatpush.bf16.msra.mxu0 %v899
  %1031 = vmatpush.bf16.msra.mxu0 %v898
  %1032 = vmatpush.bf16.msra.mxu0 %v897
  %1033 = vmatmul.bf16.gmra.mxu0 %v439
  %v1034 = vpop.f32.mrf.mxu0
  %v1035 = vadd.f32 0.0, %v1034
  %v1036 = vpop.f32.mrf.mxu0
  %v1037 = vadd.f32 0.0, %v1036
  %1038 = vmatmul.bf16.gmra.mxu0 %v440
  %v1039 = vpop.f32.mrf.mxu0
  %v1040 = vadd.f32 0.0, %v1039
  %v1041 = vpop.f32.mrf.mxu0
  %1042 = vdwg.mxu0
  %1043 = vmatpush.bf16.msra.mxu0 %v912
  %1044 = vmatpush.bf16.msra.mxu0 %v911
  %1045 = vmatpush.bf16.msra.mxu0 %v910
  %1046 = vmatpush.bf16.msra.mxu0 %v909
  %1047 = vmatpush.bf16.msra.mxu0 %v908
  %1048 = vmatpush.bf16.msra.mxu0 %v907
  %1049 = vmatpush.bf16.msra.mxu0 %v906
  %1050 = vmatpush.bf16.msra.mxu0 %v905
  %1051 = vmatmul.bf16.gmra.mxu0 %v449
  %v1052 = vpop.f32.mrf.mxu0
  %v1053 = vadd.f32 %v1035, %v1052
  %v1054 = vpop.f32.mrf.mxu0
  %v1055 = vadd.f32 %v1037, %v1054
  %1056 = vmatmul.bf16.gmra.mxu0 %v450
  %v1057 = vpop.f32.mrf.mxu0
  %v1058 = vadd.f32 %v1040, %v1057
  %v1059 = vpop.f32.mrf.mxu0
  %1060 = vdwg.mxu0
  %1061 = vmatpush.bf16.msra.mxu0 %v920
  %1062 = vmatpush.bf16.msra.mxu0 %v919
  %1063 = vmatpush.bf16.msra.mxu0 %v918
  %1064 = vmatpush.bf16.msra.mxu0 %v917
  %1065 = vmatpush.bf16.msra.mxu0 %v916
  %1066 = vmatpush.bf16.msra.mxu0 %v915
  %1067 = vmatpush.bf16.msra.mxu0 %v914
  %1068 = vmatpush.bf16.msra.mxu0 %v913
  %1069 = vmatmul.bf16.gmra.mxu0 %v459
  %v1070 = vpop.f32.mrf.mxu0
  %v1071 = vadd.f32 %v1053, %v1070
  %v1072 = vpop.f32.mrf.mxu0
  %v1073 = vadd.f32 %v1055, %v1072
  %1074 = vmatmul.bf16.gmra.mxu0 %v460
  %v1075 = vpop.f32.mrf.mxu0
  %v1076 = vadd.f32 %v1058, %v1075
  %v1077 = vpop.f32.mrf.mxu0
  %1078 = vdwg.mxu0
  %1079 = vmatpush.bf16.msra.mxu0 %v928
  %1080 = vmatpush.bf16.msra.mxu0 %v927
  %1081 = vmatpush.bf16.msra.mxu0 %v926
  %1082 = vmatpush.bf16.msra.mxu0 %v925
  %1083 = vmatpush.bf16.msra.mxu0 %v924
  %1084 = vmatpush.bf16.msra.mxu0 %v923
  %1085 = vmatpush.bf16.msra.mxu0 %v922
  %1086 = vmatpush.bf16.msra.mxu0 %v921
  %1087 = vmatmul.bf16.gmra.mxu0 %v469
  %v1088 = vpop.f32.mrf.mxu0
  %v1089 = vadd.f32 %v1071, %v1088
  %v1090 = vpop.f32.mrf.mxu0
  %v1091 = vadd.f32 %v1073, %v1090
  %1092 = vmatmul.bf16.gmra.mxu0 %v470
  %v1093 = vpop.f32.mrf.mxu0
  %v1094 = vadd.f32 %v1076, %v1093
  %v1095 = vpop.f32.mrf.mxu0
  %1096 = vdwg.mxu0
  %1097 = vmatpush.bf16.msra.mxu0 %v936
  %1098 = vmatpush.bf16.msra.mxu0 %v935
  %1099 = vmatpush.bf16.msra.mxu0 %v934
  %1100 = vmatpush.bf16.msra.mxu0 %v933
  %1101 = vmatpush.bf16.msra.mxu0 %v932
  %1102 = vmatpush.bf16.msra.mxu0 %v931
  %1103 = vmatpush.bf16.msra.mxu0 %v930
  %1104 = vmatpush.bf16.msra.mxu0 %v929
  %1105 = vmatmul.bf16.gmra.mxu0 %v479
  %v1106 = vpop.f32.mrf.mxu0
  %v1107 = vadd.f32 %v1089, %v1106
  %v1108 = vpop.f32.mrf.mxu0
  %v1109 = vadd.f32 %v1091, %v1108
  %1110 = vmatmul.bf16.gmra.mxu0 %v480
  %v1111 = vpop.f32.mrf.mxu0
  %v1112 = vadd.f32 %v1094, %v1111
  %v1113 = vpop.f32.mrf.mxu0
  %1114 = vdwg.mxu0
  %1115 = vmatpush.bf16.msra.mxu0 %v944
  %1116 = vmatpush.bf16.msra.mxu0 %v943
  %1117 = vmatpush.bf16.msra.mxu0 %v942
  %1118 = vmatpush.bf16.msra.mxu0 %v941
  %1119 = vmatpush.bf16.msra.mxu0 %v940
  %1120 = vmatpush.bf16.msra.mxu0 %v939
  %1121 = vmatpush.bf16.msra.mxu0 %v938
  %1122 = vmatpush.bf16.msra.mxu0 %v937
  %1123 = vmatmul.bf16.gmra.mxu0 %v489
  %v1124 = vpop.f32.mrf.mxu0
  %v1125 = vadd.f32 %v1107, %v1124
  %v1126 = vpop.f32.mrf.mxu0
  %v1127 = vadd.f32 %v1109, %v1126
  %1128 = vmatmul.bf16.gmra.mxu0 %v490
  %v1129 = vpop.f32.mrf.mxu0
  %v1130 = vadd.f32 %v1112, %v1129
  %v1131 = vpop.f32.mrf.mxu0
  %1132 = vdwg.mxu0
  %1133 = vmatpush.bf16.msra.mxu0 %v952
  %1134 = vmatpush.bf16.msra.mxu0 %v951
  %1135 = vmatpush.bf16.msra.mxu0 %v950
  %1136 = vmatpush.bf16.msra.mxu0 %v949
  %1137 = vmatpush.bf16.msra.mxu0 %v948
  %1138 = vmatpush.bf16.msra.mxu0 %v947
  %1139 = vmatpush.bf16.msra.mxu0 %v946
  %1140 = vmatpush.bf16.msra.mxu0 %v945
  %1141 = vmatmul.bf16.gmra.mxu0 %v499
  %v1142 = vpop.f32.mrf.mxu0
  %v1143 = vadd.f32 %v1125, %v1142
  %v1144 = vpop.f32.mrf.mxu0
  %v1145 = vadd.f32 %v1127, %v1144
  %1146 = vmatmul.bf16.gmra.mxu0 %v500
  %v1147 = vpop.f32.mrf.mxu0
  %v1148 = vadd.f32 %v1130, %v1147
  %v1149 = vpop.f32.mrf.mxu0
  %1150 = vdwg.mxu0
  %1151 = vmatpush.bf16.msra.mxu0 %v960
  %1152 = vmatpush.bf16.msra.mxu0 %v959
  %1153 = vmatpush.bf16.msra.mxu0 %v958
  %1154 = vmatpush.bf16.msra.mxu0 %v957
  %1155 = vmatpush.bf16.msra.mxu0 %v956
  %1156 = vmatpush.bf16.msra.mxu0 %v955
  %1157 = vmatpush.bf16.msra.mxu0 %v954
  %1158 = vmatpush.bf16.msra.mxu0 %v953
  %1159 = vmatmul.bf16.gmra.mxu0 %v509
  %v1160 = vpop.f32.mrf.mxu0
  %v1161 = vadd.f32 %v1143, %v1160
  %v1162 = vpop.f32.mrf.mxu0
  %v1163 = vadd.f32 %v1145, %v1162
  %1164 = vmatmul.bf16.gmra.mxu0 %v510
  %v1165 = vpop.f32.mrf.mxu0
  %v1166 = vadd.f32 %v1148, %v1165
  %v1167 = vpop.f32.mrf.mxu0
  %1168 = vdwg.mxu0
  %v1169 = vsel %vm50, %v1161, 0.0
  %v1170 = vsel %vm51, %v1163, 0.0
  %v1171 = vsel %vm52, %v1166, 0.0
  %v1172 = vadd.f32 %v1169, %v1170
  %v1173 = vadd.f32 %v1172, %v1171
  %v1174 = vrot.slane %v1173, 4
  %v1175 = vadd.f32 %v1173, %v1174
  %v1176 = vrot.slane %v1175, 2
  %v1177 = vadd.f32 %v1175, %v1176
  %v1178 = vrot.slane %v1177, 1
  %v1179 = vadd.f32 %v1177, %v1178
  %v1180 = vmul.f32 %v1169, %v1169
  %v1181 = vmul.f32 %v1170, %v1170
  %v1182 = vmul.f32 %v1171, %v1171
  %v1183 = vadd.f32 %v1180, %v1181
  %v1184 = vadd.f32 %v1183, %v1182
  %v1185 = vrot.slane %v1184, 4
  %v1186 = vadd.f32 %v1184, %v1185
  %v1187 = vrot.slane %v1186, 2
  %v1188 = vadd.f32 %v1186, %v1187
  %v1189 = vrot.slane %v1188, 1
  %v1190 = vadd.f32 %v1188, %v1189
  %v1191 = vsel %vm231, %v1179, %v1190
  %v1192 = vld [vmem:[%s6] sm:$0xff]
  %v1193 = vld [vmem:[%s6 + $0x8] sm:$0xff]
  %v1194 = vld [vmem:[%s6 + $0x10] sm:$0xff]
  %v1195 = vld [vmem:[%s6 + $0x18] sm:$0xff]
  %v1196 = vld [vmem:[%s6 + $0x20] sm:$0xff]
  %v1197 = vld [vmem:[%s6 + $0x28] sm:$0xff]
  %v1198 = vld [vmem:[%s6 + $0x30] sm:$0xff]
  %v1199 = vld [vmem:[%s6 + $0x38] sm:$0xff]
  %v1200 = vld [vmem:[%s6 + $0x40] sm:$0xff]
  %v1201 = vld [vmem:[%s6 + $0x48] sm:$0xff]
  %v1202 = vld [vmem:[%s6 + $0x50] sm:$0xff]
  %v1203 = vld [vmem:[%s6 + $0x58] sm:$0xff]
  %v1204 = vld [vmem:[%s6 + $0x60] sm:$0xff]
  %v1205 = vld [vmem:[%s6 + $0x68] sm:$0xff]
  %v1206 = vld [vmem:[%s6 + $0x70] sm:$0xff]
  %v1207 = vld [vmem:[%s6 + $0x78] sm:$0xff]
  %1208 = vmatpush.msra.mxu0 %v1207
  %1209 = vmatpush.msra.mxu0 %v1206
  %1210 = vmatpush.msra.mxu0 %v1205
  %1211 = vmatpush.msra.mxu0 %v1204
  %1212 = vmatpush.msra.mxu0 %v1203
  %1213 = vmatpush.msra.mxu0 %v1202
  %1214 = vmatpush.msra.mxu0 %v1201
  %1215 = vmatpush.msra.mxu0 %v1200
  %1216 = vmatpush.msra.mxu0 %v1199
  %1217 = vmatpush.msra.mxu0 %v1198
  %1218 = vmatpush.msra.mxu0 %v1197
  %1219 = vmatpush.msra.mxu0 %v1196
  %1220 = vmatpush.msra.mxu0 %v1195
  %1221 = vmatpush.msra.mxu0 %v1194
  %1222 = vmatpush.msra.mxu0 %v1193
  %1223 = vmatpush.msra.mxu0 %v1192
  %1224 = vmatmul.f32.gmra.mxu0 %v1191
  %v1225 = vpop.f32.mrf.mxu0
  %v1226 = vadd.f32 0.0, %v1225
  %1227 = vdwg.mxu0
  %v1228 = vmul.f32 %v1226, 0.0017361111
  %v1229 = vmul.f32 %v1228, %v1228
  %v1231 = vrot.slane %v1229, 7
  %v1233 = vsub.f32 %v1228, %v1231
  %v1234 = vadd.f32 %v1233, 1e-05
  %v1235 = vrsqrt.pop %v1234
  %v1236 = vmul.f32 %v1235, %v1234
  %v1237 = vmul.f32 %v1236, %v1235
  %v1238 = vmul.f32 0.5, %v1237
  %v1239 = vsub.f32 1.5, %v1238
  %v1240 = vmul.f32 %v1235, %v1239
  %vm1241 = vweird.f32 %v1234
  %vm1242 = vweird.f32 %v1235
  %vm1243 = vmor %vm1241, %vm1242
  %v1244 = vsel %vm1243, %v1235, %v1240
  %v1245 = vld [vmem:[%s5 + $0x2] sm:$0x1]
  %v1246 = vld [vmem:[%s5 + $0x3] sm:$0x1]
  %v1247 = vperm.slane %v1228, 0
  %v1248 = vsub.f32 %v1169, %v1247
  %v1249 = vsub.f32 %v1170, %v1247
  %v1250 = vsub.f32 %v1171, %v1247
  %v1251 = vperm.slane %v1244, 1
  %v1252 = vmul.f32 %v1248, %v1251
  %v1253 = vmul.f32 %v1249, %v1251
  %v1254 = vmul.f32 %v1250, %v1251
  %v1255 = vperm.slane %v1245, 0
  %v1256 = vmul.f32 %v1252, %v1255
  %v1257 = vmul.f32 %v1253, %v1255
  %v1258 = vmul.f32 %v1254, %v1255
  %v1259 = vperm.slane %v1246, 0
  %v1260 = vadd.f32 %v1256, %v1259
  %v1261 = vadd.f32 %v1257, %v1259
  %v1262 = vadd.f32 %v1258, %v1259
  %v1263 = vmax.f32 %v1260, 0.0
  %v1264 = vmax.f32 %v1261, 0.0
  %v1265 = vmax.f32 %v1262, 0.0
  %v1266 = vsel %vm50, %v1263, 0.0
  %v1267 = vsel %vm51, %v1264, 0.0
  %v1268 = vsel %vm52, %v1265, 0.0
  %v1270 = vrot.slane %v1266, 7
  %vm1274 = vcmask 1041408
  %v1275 = vrot.slane %v1266, 6
  %v1276 = vrot.slane %v1267, 6
  %v1277 = vsel %vm1274, %v1275, %v1276
  %v1278 = vrot.slane %v1268, 6
  %v1279 = vsel %vm1274, %v1276, %v1278
  %v1283 = vsel %vm231, %v1266, %v1270
  %v1284 = vsel %vm1274, %v1283, %v1275
  %v1285 = vrot.slane %v1267, 7
  %v1286 = vsel %vm231, %v1270, %v1285
  %v1287 = vrot.slane %v1268, 7
  %v1288 = vsel %vm231, %v1285, %v1287
  %v1291 = vpack.c.bf16 %v1277, %v1284
  %v1292 = vpack.c.bf16 %v1286, %v1283
  %v1293 = vpack.c.bf16 %v1267, %v1266
  %v1294 = vpack.c.bf16 %v1279, %v1279
  %v1295 = vpack.c.bf16 %v1288, %v1288
  %v1296 = vpack.c.bf16 %v1268, %v1268
  %v1297 = vld [vmem:[%s3] sm:$0xf]
  %v1298 = vld [vmem:[%s3 + $0x4] sm:$0xf]
  %v1299 = vld [vmem:[%s3 + $0x8] sm:$0xf]
  %v1300 = vld [vmem:[%s3 + $0xc] sm:$0xf]
  %v1301 = vld [vmem:[%s3 + $0x10] sm:$0xf]
  %v1302 = vld [vmem:[%s3 + $0x14] sm:$0xf]
  %v1303 = vld [vmem:[%s3 + $0x18] sm:$0xf]
  %v1304 = vld [vmem:[%s3 + $0x1c] sm:$0xf]
  %v1305 = vld [vmem:[%s3 + $0x20] sm:$0xf]
  %v1306 = vld [vmem:[%s3 + $0x24] sm:$0xf]
  %v1307 = vld [vmem:[%s3 + $0x28] sm:$0xf]
  %v1308 = vld [vmem:[%s3 + $0x2c] sm:$0xf]
  %v1309 = vld [vmem:[%s3 + $0x30] sm:$0xf]
  %v1310 = vld [vmem:[%s3 + $0x34] sm:$0xf]
  %v1311 = vld [vmem:[%s3 + $0x38] sm:$0xf]
  %v1312 = vld [vmem:[%s3 + $0x3c] sm:$0xf]
  %v1313 = vld [vmem:[%s3 + $0x40] sm:$0xf]
  %v1314 = vld [vmem:[%s3 + $0x44] sm:$0xf]
  %v1315 = vld [vmem:[%s3 + $0x48] sm:$0xf]
  %v1316 = vld [vmem:[%s3 + $0x4c] sm:$0xf]
  %v1317 = vld [vmem:[%s3 + $0x50] sm:$0xf]
  %v1318 = vld [vmem:[%s3 + $0x54] sm:$0xf]
  %v1319 = vld [vmem:[%s3 + $0x58] sm:$0xf]
  %v1320 = vld [vmem:[%s3 + $0x5c] sm:$0xf]
  %v1321 = vld [vmem:[%s3 + $0x60] sm:$0xf]
  %v1322 = vld [vmem:[%s3 + $0x64] sm:$0xf]
  %v1323 = vld [vmem:[%s3 + $0x68] sm:$0xf]
  %v1324 = vld [vmem:[%s3 + $0x6c] sm:$0xf]
  %v1325 = vld [vmem:[%s3 + $0x70] sm:$0xf]
  %v1326 = vld [vmem:[%s3 + $0x74] sm:$0xf]
  %v1327 = vld [vmem:[%s3 + $0x78] sm:$0xf]
  %v1328 = vld [vmem:[%s3 + $0x7c] sm:$0xf]
  %v1329 = vld [vmem:[%s3 + $0x80] sm:$0xf]
  %v1330 = vld [vmem:[%s3 + $0x84] sm:$0xf]
  %v1331 = vld [vmem:[%s3 + $0x88] sm:$0xf]
  %v1332 = vld [vmem:[%s3 + $0x8c] sm:$0xf]
  %v1333 = vld [vmem:[%s3 + $0x90] sm:$0xf]
  %v1334 = vld [vmem:[%s3 + $0x94] sm:$0xf]
  %v1335 = vld [vmem:[%s3 + $0x98] sm:$0xf]
  %v1336 = vld [vmem:[%s3 + $0x9c] sm:$0xf]
  %v1337 = vld [vmem:[%s3 + $0xa0] sm:$0xf]
  %v1338 = vld [vmem:[%s3 + $0xa4] sm:$0xf]
  %v1339 = vld [vmem:[%s3 + $0xa8] sm:$0xf]
  %v1340 = vld [vmem:[%s3 + $0xac] sm:$0xf]
  %v1341 = vld [vmem:[%s3 + $0xb0] sm:$0xf]
  %v1342 = vld [vmem:[%s3 + $0xb4] sm:$0xf]
  %v1343 = vld [vmem:[%s3 + $0xb8] sm:$0xf]
  %v1344 = vld [vmem:[%s3 + $0xbc] sm:$0xf]
  %v1393 = vunpack.c.l.b16 %v1297
  %v1394 = vunpack.c.l.b16 %v1298
  %v1395 = vunpack.c.l.b16 %v1299
  %v1396 = vunpack.c.l.b16 %v1300
  %v1397 = vunpack.c.l.b16 %v1301
  %v1398 = vunpack.c.l.b16 %v1302
  %v1399 = vunpack.c.l.b16 %v1303
  %v1400 = vunpack.c.l.b16 %v1304
  %v1401 = vunpack.c.l.b16 %v1305
  %v1402 = vunpack.c.l.b16 %v1306
  %v1403 = vunpack.c.l.b16 %v1307
  %v1404 = vunpack.c.l.b16 %v1308
  %v1405 = vunpack.c.l.b16 %v1309
  %v1406 = vunpack.c.l.b16 %v1310
  %v1407 = vunpack.c.l.b16 %v1311
  %v1408 = vunpack.c.l.b16 %v1312
  %v1409 = vunpack.c.l.b16 %v1313
  %v1410 = vunpack.c.l.b16 %v1314
  %v1411 = vunpack.c.l.b16 %v1315
  %v1412 = vunpack.c.l.b16 %v1316
  %v1413 = vunpack.c.l.b16 %v1317
  %v1414 = vunpack.c.l.b16 %v1318
  %v1415 = vunpack.c.l.b16 %v1319
  %v1416 = vunpack.c.l.b16 %v1320
  %v1417 = vunpack.c.l.b16 %v1321
  %v1418 = vunpack.c.l.b16 %v1322
  %v1419 = vunpack.c.l.b16 %v1323
  %v1420 = vunpack.c.l.b16 %v1324
  %v1421 = vunpack.c.l.b16 %v1325
  %v1422 = vunpack.c.l.b16 %v1326
  %v1423 = vunpack.c.l.b16 %v1327
  %v1424 = vunpack.c.l.b16 %v1328
  %v1425 = vunpack.c.l.b16 %v1329
  %v1426 = vunpack.c.l.b16 %v1330
  %v1427 = vunpack.c.l.b16 %v1331
  %v1428 = vunpack.c.l.b16 %v1332
  %v1429 = vunpack.c.l.b16 %v1333
  %v1430 = vunpack.c.l.b16 %v1334
  %v1431 = vunpack.c.l.b16 %v1335
  %v1432 = vunpack.c.l.b16 %v1336
  %v1433 = vunpack.c.l.b16 %v1337
  %v1434 = vunpack.c.l.b16 %v1338
  %v1435 = vunpack.c.l.b16 %v1339
  %v1436 = vunpack.c.l.b16 %v1340
  %v1437 = vunpack.c.l.b16 %v1341
  %v1438 = vunpack.c.l.b16 %v1342
  %v1439 = vunpack.c.l.b16 %v1343
  %v1440 = vunpack.c.l.b16 %v1344
  %v1441 = vpack.c.b16 %v1394, %v1393
  %v1442 = vpack.c.b16 %v1396, %v1395
  %v1443 = vpack.c.b16 %v1398, %v1397
  %v1444 = vpack.c.b16 %v1400, %v1399
  %v1445 = vpack.c.b16 %v1402, %v1401
  %v1446 = vpack.c.b16 %v1404, %v1403
  %v1447 = vpack.c.b16 %v1406, %v1405
  %v1448 = vpack.c.b16 %v1408, %v1407
  %v1449 = vpack.c.b16 %v1410, %v1409
  %v1450 = vpack.c.b16 %v1412, %v1411
  %v1451 = vpack.c.b16 %v1414, %v1413
  %v1452 = vpack.c.b16 %v1416, %v1415
  %v1453 = vpack.c.b16 %v1418, %v1417
  %v1454 = vpack.c.b16 %v1420, %v1419
  %v1455 = vpack.c.b16 %v1422, %v1421
  %v1456 = vpack.c.b16 %v1424, %v1423
  %v1457 = vpack.c.b16 %v1426, %v1425
  %v1458 = vpack.c.b16 %v1428, %v1427
  %v1459 = vpack.c.b16 %v1430, %v1429
  %v1460 = vpack.c.b16 %v1432, %v1431
  %v1461 = vpack.c.b16 %v1434, %v1433
  %v1462 = vpack.c.b16 %v1436, %v1435
  %v1463 = vpack.c.b16 %v1438, %v1437
  %v1464 = vpack.c.b16 %v1440, %v1439
  %1489 = vmatpush.bf16.msra.mxu0 %v1448
  %1490 = vmatpush.bf16.msra.mxu0 %v1447
  %1491 = vmatpush.bf16.msra.mxu0 %v1446
  %1492 = vmatpush.bf16.msra.mxu0 %v1445
  %1493 = vmatpush.bf16.msra.mxu0 %v1444
  %1494 = vmatpush.bf16.msra.mxu0 %v1443
  %1495 = vmatpush.bf16.msra.mxu0 %v1442
  %1496 = vmatpush.bf16.msra.mxu0 %v1441
  %1497 = vmatmul.bf16.gmra.mxu0 %v1291
  %v1498 = vpop.f32.mrf.mxu0
  %v1499 = vadd.f32 0.0, %v1498
  %v1500 = vpop.f32.mrf.mxu0
  %v1501 = vadd.f32 0.0, %v1500
  %1502 = vmatmul.bf16.gmra.mxu0 %v1294
  %v1503 = vpop.f32.mrf.mxu0
  %v1504 = vadd.f32 0.0, %v1503
  %v1505 = vpop.f32.mrf.mxu0
  %1506 = vdwg.mxu0
  %1507 = vmatpush.bf16.msra.mxu0 %v1456
  %1508 = vmatpush.bf16.msra.mxu0 %v1455
  %1509 = vmatpush.bf16.msra.mxu0 %v1454
  %1510 = vmatpush.bf16.msra.mxu0 %v1453
  %1511 = vmatpush.bf16.msra.mxu0 %v1452
  %1512 = vmatpush.bf16.msra.mxu0 %v1451
  %1513 = vmatpush.bf16.msra.mxu0 %v1450
  %1514 = vmatpush.bf16.msra.mxu0 %v1449
  %1515 = vmatmul.bf16.gmra.mxu0 %v1292
  %v1516 = vpop.f32.mrf.mxu0
  %v1517 = vadd.f32 %v1499, %v1516
  %v1518 = vpop.f32.mrf.mxu0
  %v1519 = vadd.f32 %v1501, %v1518
  %1520 = vmatmul.bf16.gmra.mxu0 %v1295
  %v1521 = vpop.f32.mrf.mxu0
  %v1522 = vadd.f32 %v1504, %v1521
  %v1523 = vpop.f32.mrf.mxu0
  %1524 = vdwg.mxu0
  %1525 = vmatpush.bf16.msra.mxu0 %v1464
  %1526 = vmatpush.bf16.msra.mxu0 %v1463
  %1527 = vmatpush.bf16.msra.mxu0 %v1462
  %1528 = vmatpush.bf16.msra.mxu0 %v1461
  %1529 = vmatpush.bf16.msra.mxu0 %v1460
  %1530 = vmatpush.bf16.msra.mxu0 %v1459
  %1531 = vmatpush.bf16.msra.mxu0 %v1458
  %1532 = vmatpush.bf16.msra.mxu0 %v1457
  %1533 = vmatmul.bf16.gmra.mxu0 %v1293
  %v1534 = vpop.f32.mrf.mxu0
  %v1535 = vadd.f32 %v1517, %v1534
  %v1536 = vpop.f32.mrf.mxu0
  %v1537 = vadd.f32 %v1519, %v1536
  %1538 = vmatmul.bf16.gmra.mxu0 %v1296
  %v1539 = vpop.f32.mrf.mxu0
  %v1540 = vadd.f32 %v1522, %v1539
  %v1541 = vpop.f32.mrf.mxu0
  %1542 = vdwg.mxu0
  %v1543 = vsel %vm50, %v1535, 0.0
  %v1544 = vsel %vm51, %v1537, 0.0
  %v1545 = vsel %vm52, %v1540, 0.0
  %v1546 = vadd.f32 %v1543, %v1544
  %v1547 = vadd.f32 %v1546, %v1545
  %v1548 = vrot.slane %v1547, 4
  %v1549 = vadd.f32 %v1547, %v1548
  %v1550 = vrot.slane %v1549, 2
  %v1551 = vadd.f32 %v1549, %v1550
  %v1552 = vrot.slane %v1551, 1
  %v1553 = vadd.f32 %v1551, %v1552
  %v1554 = vmul.f32 %v1543, %v1543
  %v1555 = vmul.f32 %v1544, %v1544
  %v1556 = vmul.f32 %v1545, %v1545
  %v1557 = vadd.f32 %v1554, %v1555
  %v1558 = vadd.f32 %v1557, %v1556
  %v1559 = vrot.slane %v1558, 4
  %v1560 = vadd.f32 %v1558, %v1559
  %v1561 = vrot.slane %v1560, 2
  %v1562 = vadd.f32 %v1560, %v1561
  %v1563 = vrot.slane %v1562, 1
  %v1564 = vadd.f32 %v1562, %v1563
  %v1565 = vsel %vm231, %v1553, %v1564
  %1566 = vmatpush.msra.mxu0 %v1207
  %1567 = vmatpush.msra.mxu0 %v1206
  %1568 = vmatpush.msra.mxu0 %v1205
  %1569 = vmatpush.msra.mxu0 %v1204
  %1570 = vmatpush.msra.mxu0 %v1203
  %1571 = vmatpush.msra.mxu0 %v1202
  %1572 = vmatpush.msra.mxu0 %v1201
  %1573 = vmatpush.msra.mxu0 %v1200
  %1574 = vmatpush.msra.mxu0 %v1199
  %1575 = vmatpush.msra.mxu0 %v1198
  %1576 = vmatpush.msra.mxu0 %v1197
  %1577 = vmatpush.msra.mxu0 %v1196
  %1578 = vmatpush.msra.mxu0 %v1195
  %1579 = vmatpush.msra.mxu0 %v1194
  %1580 = vmatpush.msra.mxu0 %v1193
  %1581 = vmatpush.msra.mxu0 %v1192
  %1582 = vmatmul.f32.gmra.mxu0 %v1565
  %v1583 = vpop.f32.mrf.mxu0
  %v1584 = vadd.f32 0.0, %v1583
  %1585 = vdwg.mxu0
  %v1586 = vmul.f32 %v1584, 0.0017361111
  %v1587 = vmul.f32 %v1586, %v1586
  %v1589 = vrot.slane %v1587, 7
  %v1591 = vsub.f32 %v1586, %v1589
  %v1592 = vadd.f32 %v1591, 1e-05
  %v1593 = vrsqrt.pop %v1592
  %v1594 = vmul.f32 %v1593, %v1592
  %v1595 = vmul.f32 %v1594, %v1593
  %v1596 = vmul.f32 0.5, %v1595
  %v1597 = vsub.f32 1.5, %v1596
  %v1598 = vmul.f32 %v1593, %v1597
  %vm1599 = vweird.f32 %v1592
  %vm1600 = vweird.f32 %v1593
  %vm1601 = vmor %vm1599, %vm1600
  %v1602 = vsel %vm1601, %v1593, %v1598
  %v1603 = vld [vmem:[%s5 + $0x4] sm:$0x1]
  %v1604 = vld [vmem:[%s5 + $0x5] sm:$0x1]
  %v1605 = vperm.slane %v1586, 0
  %v1606 = vsub.f32 %v1543, %v1605
  %v1607 = vsub.f32 %v1544, %v1605
  %v1608 = vsub.f32 %v1545, %v1605
  %v1609 = vperm.slane %v1602, 1
  %v1610 = vmul.f32 %v1606, %v1609
  %v1611 = vmul.f32 %v1607, %v1609
  %v1612 = vmul.f32 %v1608, %v1609
  %v1613 = vperm.slane %v1603, 0
  %v1614 = vmul.f32 %v1610, %v1613
  %v1615 = vmul.f32 %v1611, %v1613
  %v1616 = vmul.f32 %v1612, %v1613
  %v1617 = vperm.slane %v1604, 0
  %v1618 = vadd.f32 %v1614, %v1617
  %v1619 = vadd.f32 %v1615, %v1617
  %v1620 = vadd.f32 %v1616, %v1617
  %v1621 = vmax.f32 %v1618, 0.0
  %v1622 = vmax.f32 %v1619, 0.0
  %v1623 = vmax.f32 %v1620, 0.0
  %v1624 = vsel %vm50, %v1621, 0.0
  %v1625 = vsel %vm51, %v1622, 0.0
  %v1626 = vsel %vm52, %v1623, 0.0
  %v1627 = vadd.f32 %v1624, %v1266
  %v1628 = vadd.f32 %v1625, %v1267
  %v1629 = vadd.f32 %v1626, %v1268
  %v1630 = vmul.f32 %v1627, 0.70710677
  %v1631 = vmul.f32 %v1628, 0.70710677
  %v1632 = vmul.f32 %v1629, 0.70710677
  %v1634 = vrot.slane %v1630, 7
  %v1638 = vrot.slane %v1630, 6
  %v1639 = vrot.slane %v1631, 6
  %v1640 = vsel %vm1274, %v1638, %v1639
  %v1641 = vrot.slane %v1632, 6
  %v1642 = vsel %vm1274, %v1639, %v1641
  %v1646 = vsel %vm231, %v1630, %v1634
  %v1647 = vsel %vm1274, %v1646, %v1638
  %v1648 = vrot.slane %v1631, 7
  %v1649 = vsel %vm231, %v1634, %v1648
  %v1650 = vrot.slane %v1632, 7
  %v1651 = vsel %vm231, %v1648, %v1650
  %v1654 = vpack.c.bf16 %v1640, %v1647
  %v1655 = vpack.c.bf16 %v1649, %v1646
  %v1656 = vpack.c.bf16 %v1631, %v1630
  %v1657 = vpack.c.bf16 %v1642, %v1642
  %v1658 = vpack.c.bf16 %v1651, %v1651
  %v1659 = vpack.c.bf16 %v1632, %v1632
  %v1660 = vld [vmem:[%s4] sm:$0xf]
  %v1661 = vld [vmem:[%s4 + $0x4] sm:$0xf]
  %v1662 = vld [vmem:[%s4 + $0x8] sm:$0xf]
  %v1663 = vld [vmem:[%s4 + $0xc] sm:$0xf]
  %v1664 = vld [vmem:[%s4 + $0x10] sm:$0xf]
  %v1665 = vld [vmem:[%s4 + $0x14] sm:$0xf]
  %v1666 = vld [vmem:[%s4 + $0x18] sm:$0xf]
  %v1667 = vld [vmem:[%s4 + $0x1c] sm:$0xf]
  %v1668 = vld [vmem:[%s4 + $0x20] sm:$0xf]
  %v1669 = vld [vmem:[%s4 + $0x24] sm:$0xf]
  %v1670 = vld [vmem:[%s4 + $0x28] sm:$0xf]
  %v1671 = vld [vmem:[%s4 + $0x2c] sm:$0xf]
  %v1672 = vld [vmem:[%s4 + $0x30] sm:$0xf]
  %v1673 = vld [vmem:[%s4 + $0x34] sm:$0xf]
  %v1674 = vld [vmem:[%s4 + $0x38] sm:$0xf]
  %v1675 = vld [vmem:[%s4 + $0x3c] sm:$0xf]
  %v1676 = vld [vmem:[%s4 + $0x40] sm:$0xf]
  %v1677 = vld [vmem:[%s4 + $0x44] sm:$0xf]
  %v1678 = vld [vmem:[%s4 + $0x48] sm:$0xf]
  %v1679 = vld [vmem:[%s4 + $0x4c] sm:$0xf]
  %v1680 = vld [vmem:[%s4 + $0x50] sm:$0xf]
  %v1681 = vld [vmem:[%s4 + $0x54] sm:$0xf]
  %v1682 = vld [vmem:[%s4 + $0x58] sm:$0xf]
  %v1683 = vld [vmem:[%s4 + $0x5c] sm:$0xf]
  %v1684 = vld [vmem:[%s4 + $0x60] sm:$0xf]
  %v1685 = vld [vmem:[%s4 + $0x64] sm:$0xf]
  %v1686 = vld [vmem:[%s4 + $0x68] sm:$0xf]
  %v1687 = vld [vmem:[%s4 + $0x6c] sm:$0xf]
  %v1688 = vld [vmem:[%s4 + $0x70] sm:$0xf]
  %v1689 = vld [vmem:[%s4 + $0x74] sm:$0xf]
  %v1690 = vld [vmem:[%s4 + $0x78] sm:$0xf]
  %v1691 = vld [vmem:[%s4 + $0x7c] sm:$0xf]
  %v1692 = vld [vmem:[%s4 + $0x80] sm:$0xf]
  %v1693 = vld [vmem:[%s4 + $0x84] sm:$0xf]
  %v1694 = vld [vmem:[%s4 + $0x88] sm:$0xf]
  %v1695 = vld [vmem:[%s4 + $0x8c] sm:$0xf]
  %v1696 = vld [vmem:[%s4 + $0x90] sm:$0xf]
  %v1697 = vld [vmem:[%s4 + $0x94] sm:$0xf]
  %v1698 = vld [vmem:[%s4 + $0x98] sm:$0xf]
  %v1699 = vld [vmem:[%s4 + $0x9c] sm:$0xf]
  %v1700 = vld [vmem:[%s4 + $0xa0] sm:$0xf]
  %v1701 = vld [vmem:[%s4 + $0xa4] sm:$0xf]
  %v1702 = vld [vmem:[%s4 + $0xa8] sm:$0xf]
  %v1703 = vld [vmem:[%s4 + $0xac] sm:$0xf]
  %v1704 = vld [vmem:[%s4 + $0xb0] sm:$0xf]
  %v1705 = vld [vmem:[%s4 + $0xb4] sm:$0xf]
  %v1706 = vld [vmem:[%s4 + $0xb8] sm:$0xf]
  %v1707 = vld [vmem:[%s4 + $0xbc] sm:$0xf]
  %v1756 = vunpack.c.l.b16 %v1660
  %v1757 = vunpack.c.l.b16 %v1661
  %v1758 = vunpack.c.l.b16 %v1662
  %v1759 = vunpack.c.l.b16 %v1663
  %v1760 = vunpack.c.l.b16 %v1664
  %v1761 = vunpack.c.l.b16 %v1665
  %v1762 = vunpack.c.l.b16 %v1666
  %v1763 = vunpack.c.l.b16 %v1667
  %v1764 = vunpack.c.l.b16 %v1668
  %v1765 = vunpack.c.l.b16 %v1669
  %v1766 = vunpack.c.l.b16 %v1670
  %v1767 = vunpack.c.l.b16 %v1671
  %v1768 = vunpack.c.l.b16 %v1672
  %v1769 = vunpack.c.l.b16 %v1673
  %v1770 = vunpack.c.l.b16 %v1674
  %v1771 = vunpack.c.l.b16 %v1675
  %v1772 = vunpack.c.l.b16 %v1676
  %v1773 = vunpack.c.l.b16 %v1677
  %v1774 = vunpack.c.l.b16 %v1678
  %v1775 = vunpack.c.l.b16 %v1679
  %v1776 = vunpack.c.l.b16 %v1680
  %v1777 = vunpack.c.l.b16 %v1681
  %v1778 = vunpack.c.l.b16 %v1682
  %v1779 = vunpack.c.l.b16 %v1683
  %v1780 = vunpack.c.l.b16 %v1684
  %v1781 = vunpack.c.l.b16 %v1685
  %v1782 = vunpack.c.l.b16 %v1686
  %v1783 = vunpack.c.l.b16 %v1687
  %v1784 = vunpack.c.l.b16 %v1688
  %v1785 = vunpack.c.l.b16 %v1689
  %v1786 = vunpack.c.l.b16 %v1690
  %v1787 = vunpack.c.l.b16 %v1691
  %v1788 = vunpack.c.l.b16 %v1692
  %v1789 = vunpack.c.l.b16 %v1693
  %v1790 = vunpack.c.l.b16 %v1694
  %v1791 = vunpack.c.l.b16 %v1695
  %v1792 = vunpack.c.l.b16 %v1696
  %v1793 = vunpack.c.l.b16 %v1697
  %v1794 = vunpack.c.l.b16 %v1698
  %v1795 = vunpack.c.l.b16 %v1699
  %v1796 = vunpack.c.l.b16 %v1700
  %v1797 = vunpack.c.l.b16 %v1701
  %v1798 = vunpack.c.l.b16 %v1702
  %v1799 = vunpack.c.l.b16 %v1703
  %v1800 = vunpack.c.l.b16 %v1704
  %v1801 = vunpack.c.l.b16 %v1705
  %v1802 = vunpack.c.l.b16 %v1706
  %v1803 = vunpack.c.l.b16 %v1707
  %v1804 = vpack.c.b16 %v1757, %v1756
  %v1805 = vpack.c.b16 %v1759, %v1758
  %v1806 = vpack.c.b16 %v1761, %v1760
  %v1807 = vpack.c.b16 %v1763, %v1762
  %v1808 = vpack.c.b16 %v1765, %v1764
  %v1809 = vpack.c.b16 %v1767, %v1766
  %v1810 = vpack.c.b16 %v1769, %v1768
  %v1811 = vpack.c.b16 %v1771, %v1770
  %v1812 = vpack.c.b16 %v1773, %v1772
  %v1813 = vpack.c.b16 %v1775, %v1774
  %v1814 = vpack.c.b16 %v1777, %v1776
  %v1815 = vpack.c.b16 %v1779, %v1778
  %v1816 = vpack.c.b16 %v1781, %v1780
  %v1817 = vpack.c.b16 %v1783, %v1782
  %v1818 = vpack.c.b16 %v1785, %v1784
  %v1819 = vpack.c.b16 %v1787, %v1786
  %v1820 = vpack.c.b16 %v1789, %v1788
  %v1821 = vpack.c.b16 %v1791, %v1790
  %v1822 = vpack.c.b16 %v1793, %v1792
  %v1823 = vpack.c.b16 %v1795, %v1794
  %v1824 = vpack.c.b16 %v1797, %v1796
  %v1825 = vpack.c.b16 %v1799, %v1798
  %v1826 = vpack.c.b16 %v1801, %v1800
  %v1827 = vpack.c.b16 %v1803, %v1802
  %1852 = vmatpush.bf16.msra.mxu0 %v1811
  %1853 = vmatpush.bf16.msra.mxu0 %v1810
  %1854 = vmatpush.bf16.msra.mxu0 %v1809
  %1855 = vmatpush.bf16.msra.mxu0 %v1808
  %1856 = vmatpush.bf16.msra.mxu0 %v1807
  %1857 = vmatpush.bf16.msra.mxu0 %v1806
  %1858 = vmatpush.bf16.msra.mxu0 %v1805
  %1859 = vmatpush.bf16.msra.mxu0 %v1804
  %1860 = vmatmul.bf16.gmra.mxu0 %v1654
  %v1861 = vpop.f32.mrf.mxu0
  %v1862 = vadd.f32 0.0, %v1861
  %v1863 = vpop.f32.mrf.mxu0
  %v1864 = vadd.f32 0.0, %v1863
  %1865 = vmatmul.bf16.gmra.mxu0 %v1657
  %v1866 = vpop.f32.mrf.mxu0
  %v1867 = vadd.f32 0.0, %v1866
  %v1868 = vpop.f32.mrf.mxu0
  %1869 = vdwg.mxu0
  %1870 = vmatpush.bf16.msra.mxu0 %v1819
  %1871 = vmatpush.bf16.msra.mxu0 %v1818
  %1872 = vmatpush.bf16.msra.mxu0 %v1817
  %1873 = vmatpush.bf16.msra.mxu0 %v1816
  %1874 = vmatpush.bf16.msra.mxu0 %v1815
  %1875 = vmatpush.bf16.msra.mxu0 %v1814
  %1876 = vmatpush.bf16.msra.mxu0 %v1813
  %1877 = vmatpush.bf16.msra.mxu0 %v1812
  %1878 = vmatmul.bf16.gmra.mxu0 %v1655
  %v1879 = vpop.f32.mrf.mxu0
  %v1880 = vadd.f32 %v1862, %v1879
  %v1881 = vpop.f32.mrf.mxu0
  %v1882 = vadd.f32 %v1864, %v1881
  %1883 = vmatmul.bf16.gmra.mxu0 %v1658
  %v1884 = vpop.f32.mrf.mxu0
  %v1885 = vadd.f32 %v1867, %v1884
  %v1886 = vpop.f32.mrf.mxu0
  %1887 = vdwg.mxu0
  %1888 = vmatpush.bf16.msra.mxu0 %v1827
  %1889 = vmatpush.bf16.msra.mxu0 %v1826
  %1890 = vmatpush.bf16.msra.mxu0 %v1825
  %1891 = vmatpush.bf16.msra.mxu0 %v1824
  %1892 = vmatpush.bf16.msra.mxu0 %v1823
  %1893 = vmatpush.bf16.msra.mxu0 %v1822
  %1894 = vmatpush.bf16.msra.mxu0 %v1821
  %1895 = vmatpush.bf16.msra.mxu0 %v1820
  %1896 = vmatmul.bf16.gmra.mxu0 %v1656
  %v1897 = vpop.f32.mrf.mxu0
  %v1898 = vadd.f32 %v1880, %v1897
  %v1899 = vpop.f32.mrf.mxu0
  %v1900 = vadd.f32 %v1882, %v1899
  %1901 = vmatmul.bf16.gmra.mxu0 %v1659
  %v1902 = vpop.f32.mrf.mxu0
  %v1903 = vadd.f32 %v1885, %v1902
  %v1904 = vpop.f32.mrf.mxu0
  %1905 = vdwg.mxu0
  %v1906 = vsel %vm50, %v1898, 0.0
  %v1907 = vsel %vm51, %v1900, 0.0
  %v1908 = vsel %vm52, %v1903, 0.0
  %v1909 = vadd.f32 %v1906, %v1907
  %v1910 = vadd.f32 %v1909, %v1908
  %v1911 = vrot.slane %v1910, 4
  %v1912 = vadd.f32 %v1910, %v1911
  %v1913 = vrot.slane %v1912, 2
  %v1914 = vadd.f32 %v1912, %v1913
  %v1915 = vrot.slane %v1914, 1
  %v1916 = vadd.f32 %v1914, %v1915
  %v1917 = vmul.f32 %v1906, %v1906
  %v1918 = vmul.f32 %v1907, %v1907
  %v1919 = vmul.f32 %v1908, %v1908
  %v1920 = vadd.f32 %v1917, %v1918
  %v1921 = vadd.f32 %v1920, %v1919
  %v1922 = vrot.slane %v1921, 4
  %v1923 = vadd.f32 %v1921, %v1922
  %v1924 = vrot.slane %v1923, 2
  %v1925 = vadd.f32 %v1923, %v1924
  %v1926 = vrot.slane %v1925, 1
  %v1927 = vadd.f32 %v1925, %v1926
  %v1928 = vsel %vm231, %v1916, %v1927
  %1929 = vmatpush.msra.mxu0 %v1207
  %1930 = vmatpush.msra.mxu0 %v1206
  %1931 = vmatpush.msra.mxu0 %v1205
  %1932 = vmatpush.msra.mxu0 %v1204
  %1933 = vmatpush.msra.mxu0 %v1203
  %1934 = vmatpush.msra.mxu0 %v1202
  %1935 = vmatpush.msra.mxu0 %v1201
  %1936 = vmatpush.msra.mxu0 %v1200
  %1937 = vmatpush.msra.mxu0 %v1199
  %1938 = vmatpush.msra.mxu0 %v1198
  %1939 = vmatpush.msra.mxu0 %v1197
  %1940 = vmatpush.msra.mxu0 %v1196
  %1941 = vmatpush.msra.mxu0 %v1195
  %1942 = vmatpush.msra.mxu0 %v1194
  %1943 = vmatpush.msra.mxu0 %v1193
  %1944 = vmatpush.msra.mxu0 %v1192
  %1945 = vmatmul.f32.gmra.mxu0 %v1928
  %v1946 = vpop.f32.mrf.mxu0
  %v1947 = vadd.f32 0.0, %v1946
  %1948 = vdwg.mxu0
  %v1949 = vmul.f32 %v1947, 0.0017361111
  %v1950 = vmul.f32 %v1949, %v1949
  %v1952 = vrot.slane %v1950, 7
  %v1954 = vsub.f32 %v1949, %v1952
  %v1955 = vadd.f32 %v1954, 1e-05
  %v1956 = vrsqrt.pop %v1955
  %v1957 = vmul.f32 %v1956, %v1955
  %v1958 = vmul.f32 %v1957, %v1956
  %v1959 = vmul.f32 0.5, %v1958
  %v1960 = vsub.f32 1.5, %v1959
  %v1961 = vmul.f32 %v1956, %v1960
  %vm1962 = vweird.f32 %v1955
  %vm1963 = vweird.f32 %v1956
  %vm1964 = vmor %vm1962, %vm1963
  %v1965 = vsel %vm1964, %v1956, %v1961
  %v1966 = vld [vmem:[%s5 + $0x6] sm:$0x1]
  %v1967 = vld [vmem:[%s5 + $0x7] sm:$0x1]
  %v1968 = vperm.slane %v1949, 0
  %v1969 = vsub.f32 %v1906, %v1968
  %v1970 = vsub.f32 %v1907, %v1968
  %v1971 = vsub.f32 %v1908, %v1968
  %v1972 = vperm.slane %v1965, 1
  %v1973 = vmul.f32 %v1969, %v1972
  %v1974 = vmul.f32 %v1970, %v1972
  %v1975 = vmul.f32 %v1971, %v1972
  %v1976 = vperm.slane %v1966, 0
  %v1977 = vmul.f32 %v1973, %v1976
  %v1978 = vmul.f32 %v1974, %v1976
  %v1979 = vmul.f32 %v1975, %v1976
  %v1980 = vperm.slane %v1967, 0
  %v1981 = vadd.f32 %v1977, %v1980
  %v1982 = vadd.f32 %v1978, %v1980
  %v1983 = vadd.f32 %v1979, %v1980
  %v1984 = vmax.f32 %v1981, 0.0
  %v1985 = vmax.f32 %v1982, 0.0
  %v1986 = vmax.f32 %v1983, 0.0
  %v1987 = vsel %vm50, %v1984, 0.0
  %v1988 = vsel %vm51, %v1985, 0.0
  %v1989 = vsel %vm52, %v1986, 0.0
  %v1990 = vadd.f32 %v1987, %v1630
  %v1991 = vadd.f32 %v1988, %v1631
  %v1992 = vadd.f32 %v1989, %v1632
  %v1993 = vmul.f32 %v1990, 0.70710677
  %v1994 = vmul.f32 %v1991, 0.70710677
  %v1995 = vmul.f32 %v1992, 0.70710677
  %v1996 = vadd.f32 %v1993, %v1994
  %v1997 = vadd.f32 %v1996, %v1995
  %1998 = vadd.xlane.f32.xlu0 %v1997
  %v1999 = vpop.xlane.xlu0 %1998
  %v2000 = vrot.slane %v1999, 4
  %v2001 = vadd.f32 %v1999, %v2000
  %v2002 = vrot.slane %v2001, 2
  %v2003 = vadd.f32 %v2001, %v2002
  %v2004 = vrot.slane %v2003, 1
  %v2005 = vadd.f32 %v2003, %v2004
  %s2006 = vtos %v2005
  %v2007 = vmul.f32 %v1993, %v1993
  %v2008 = vmul.f32 %v1994, %v1994
  %v2009 = vmul.f32 %v1995, %v1995
  %v2010 = vadd.f32 %v2007, %v2008
  %v2011 = vadd.f32 %v2010, %v2009
  %2012 = vadd.xlane.f32.xlu0 %v2011
  %v2013 = vpop.xlane.xlu0 %2012
  %v2014 = vrot.slane %v2013, 4
  %v2015 = vadd.f32 %v2013, %v2014
  %v2016 = vrot.slane %v2015, 2
  %v2017 = vadd.f32 %v2015, %v2016
  %v2018 = vrot.slane %v2017, 1
  %v2019 = vadd.f32 %v2017, %v2018
  %s2020 = vtos %v2019
  %s2021 = smul.f32 %s2006, 0.00086805556
  %s2022 = smul.f32 %s2020, 0.00086805556
  %s2023 = smul.f32 %s2021, %s2021
  %s2024 = ssub.f32 %s2022, %s2023
  %s2025 = sadd.f32 %s2024, 1e-05
  %v2026 = vstv %s2025
  %v2027 = vrsqrt.pop %v2026
  %v2028 = vmul.f32 %v2027, %v2026
  %v2029 = vmul.f32 %v2028, %v2027
  %v2030 = vmul.f32 0.5, %v2029
  %v2031 = vsub.f32 1.5, %v2030
  %v2032 = vmul.f32 %v2027, %v2031
  %vm2033 = vweird.f32 %v2026
  %vm2034 = vweird.f32 %v2027
  %vm2035 = vmor %vm2033, %vm2034
  %v2036 = vsel %vm2035, %v2027, %v2032
  %s2037 = vtos %v2036
  %v2038 = vstv %s2021
  %v2039 = vsub.f32 %v1993, %v2038
  %v2040 = vsub.f32 %v1994, %v2038
  %v2041 = vsub.f32 %v1995, %v2038
  %v2042 = vstv %s2037
  %v2043 = vmul.f32 %v2039, %v2042
  %v2044 = vmul.f32 %v2040, %v2042
  %v2045 = vmul.f32 %v2041, %v2042
  %2046 = vst [vmem:[%s7] sm:$0xff] %v2043
  %2047 = vst [vmem:[%s7 + $0x8] sm:$0xff] %v2044
  %2048 = vst [vmem:[%s7 + $0x10] sm:$0xff] %v2045
  // Predicated region
  $region30: #{_forward_impl.1} parent=0 // pred_check
    _
  $region31: #{_forward_impl.1} parent=0 // pred_check_branch
    %2050 = sbr.rel (0) target = $region33
  $region32: #{_forward_impl.1} parent=0 // pred_region
    _
  $region33: #{_forward_impl.1} parent=0 // pred_fallthru
    _
  // Predicated region
  $region34: #{_forward_impl.1} parent=0 // pred_check
    _
  $region35: #{_forward_impl.1} parent=0 // pred_check_branch
    %2052 = sbr.rel (0) target = $region37
  $region36: #{_forward_impl.1} parent=0 // pred_region
    _
  $region37: #{_forward_impl.1} parent=0 // pred_fallthru
    _

</llo_original>
